<compile_context>
chip_gen: v5e
topology: v5e:2x2
jax: 0.10.0
libtpu: 0.0.40
codegen_flags: <defaults>
</compile_context>

<pallas_src>
import functools

import jax
import jax.numpy as jnp
from jax.experimental import pallas as pl
from jax.experimental.pallas import tpu as pltpu

_VMEM = pl.BlockSpec(memory_space=pltpu.MemorySpace.VMEM)


def _lrelu(y):
    # nn.LeakyReLU(0.5) from the reference module (non-default slope).
    return jnp.where(y >= 0.0, y, 0.5 * y)


# ----------------------------------------------------------------------------
# Parameter slab layout (fixed by the module architecture: 12/20/6/10/12 dims).
# Each tensor starts on an 8-row (sublane-tile) boundary inside a (rows, 128)
# f32 slab, so in-kernel recovery is a clean static slice.
# ----------------------------------------------------------------------------
_PARAM_SHAPES = (
    # encoder GRU1 (in=12, H=20), fused-gate layout [r|z|n]
    ("wi1", (12, 60)), ("wh1", (20, 60)), ("bi1", (1, 60)), ("bhn1", (1, 20)),
    ("w11", (20, 12)), ("b11", (1, 12)),              # line11 (pre-transposed)
    # decoder GRU2 (in=6, H=10)
    ("wi2", (6, 30)), ("wh2", (10, 30)), ("bi2", (1, 30)), ("bhn2", (1, 10)),
    ("w2", (10, 12)), ("b2", (1, 12)),                # line2
    # decoder GRU3 (in=6, H=12)
    ("wi3", (6, 36)), ("wh3", (12, 36)), ("bi3", (1, 36)), ("bhn3", (1, 12)),
    ("w3", (12, 1)), ("b3", (1, 1)),                  # line3
)


def _build_layout():
    layout, row = {}, 0
    for name, (r, c) in _PARAM_SHAPES:
        layout[name] = (row, r, c)
        row += -(-r // 8) * 8                         # round rows up to sublane tile
    return layout, row


_PARAM_LAYOUT, _SLAB_ROWS = _build_layout()           # 216 rows x 128 lanes (~110 KB)


# ----------------------------------------------------------------------------
# Fused kernel: entire gruvae.forward
# ----------------------------------------------------------------------------
def _gruvae_kernel(x_ref, noise_ref, slab_ref, out_ref, *, step):
    f32 = jnp.float32
    T = step
    B = noise_ref.shape[0]
    d_in = x_ref.shape[1] // T                        # 12 (module feature width)
    Nw = B - T                                        # number of sliding windows

    def par(name):                                    # static slice into the param slab
        row, r, c = _PARAM_LAYOUT[name]
        return slab_ref[row:row + r, 0:c]

    H1 = _PARAM_LAYOUT["wh1"][1]                      # 20
    H2 = _PARAM_LAYOUT["wh2"][1]                      # 10
    H3 = _PARAM_LAYOUT["wh3"][1]                      # 12
    d2 = _PARAM_LAYOUT["w2"][2]                       # 12 (decoder2 feature width)

    # ---------------- encoder: gru1 (h0 = 0), fused [r|z|n] gates ----------------
    wi1, wh1, bi1 = par("wi1"), par("wh1"), par("bi1")
    bhn1 = jnp.broadcast_to(par("bhn1"), (B, H1))     # hoisted broadcast (no CSE in-loop)

    x2d = x_ref[...]                                  # (B, T*d_in), lane-packed per step
    # Input projections for every step; independent of h -> off the recurrent
    # chain, MXU slack hides them (input + recurrent r/z biases pre-folded).
    xg1 = [jnp.dot(x2d[:, t * d_in:(t + 1) * d_in], wi1,
                   preferred_element_type=f32) + bi1 for t in range(T)]

    h1 = jnp.zeros((B, H1), f32)
    for t in range(T):                                # T == 4: fully unrolled
        g = xg1[t]
        hp = jnp.dot(h1, wh1, preferred_element_type=f32)   # only matmul on the chain
        rz = jax.nn.sigmoid(g[:, :2 * H1] + hp[:, :2 * H1]) # one EUP push for r and z
        r, z = rz[:, :H1], rz[:, H1:]
        n = jnp.tanh(g[:, 2 * H1:] + r * (hp[:, 2 * H1:] + bhn1))
        h1 = (1.0 - z) * n + z * h1

    # line11 + LeakyReLU + residual at t = T-1 (the only position consumed downstream).
    y = _lrelu(jnp.dot(h1, par("w11"), preferred_element_type=f32) + par("b11"))
    enc_last = y + x2d[:, (T - 1) * d_in:T * d_in]    # (B, 12)

    # ---------------- reparameterization + KLD ----------------
    half = d_in // 2
    mu = enc_last[:, :half]                           # (B, 6)
    sigma = enc_last[:, half:]                        # (B, 6)
    h_lat = mu + sigma * noise_ref[...]               # (B, 6)
    s2 = sigma * sigma
    kld = (0.5 / B) * jnp.sum(mu * mu + s2 - jnp.log(1e-8 + s2) - 1.0)

    # ---------------- decoders: gru2 & gru3 over sliding windows ----------------
    wi2, wh2 = par("wi2"), par("wh2")
    wi3, wh3 = par("wi3"), par("wh3")
    xp2 = jnp.dot(h_lat, wi2, preferred_element_type=f32) + par("bi2")   # (B, 3H2)
    xp3 = jnp.dot(h_lat, wi3, preferred_element_type=f32) + par("bi3")   # (B, 3H3)
    bhn2 = jnp.broadcast_to(par("bhn2"), (Nw, H2))
    bhn3 = jnp.broadcast_to(par("bhn3"), (Nw, H3))
    w2 = par("w2")
    b2 = jnp.broadcast_to(par("b2"), (Nw, d2))

    h2 = jnp.zeros((Nw, H2), f32)
    h3 = jnp.zeros((Nw, H3), f32)
    for t in range(T):                                # fully unrolled, chains interleaved
        xp2_t = xp2[t:t + Nw, :]                      # window i reads latent row i + t
        xp3_t = xp3[t:t + Nw, :]

        hp2 = jnp.dot(h2, wh2, preferred_element_type=f32)
        rz2 = jax.nn.sigmoid(xp2_t[:, :2 * H2] + hp2[:, :2 * H2])
        r2, z2 = rz2[:, :H2], rz2[:, H2:]
        n2 = jnp.tanh(xp2_t[:, 2 * H2:] + r2 * (hp2[:, 2 * H2:] + bhn2))
        h2 = (1.0 - z2) * n2 + z2 * h2

        hp3 = jnp.dot(h3, wh3, preferred_element_type=f32)
        rz3 = jax.nn.sigmoid(xp3_t[:, :2 * H3] + hp3[:, :2 * H3])
        r3, z3 = rz3[:, :H3], rz3[:, H3:]
        n3 = jnp.tanh(xp3_t[:, 2 * H3:] + r3 * (hp3[:, 2 * H3:] + bhn3))
        h3 = (1.0 - z3) * n3 + z3 * h3

        # decoder2 = lr(line2(gru2_out)) at every timestep, stored lane-packed
        # so the wrapper's (Nw, T, 12) view is a free reshape.
        out_ref[:, t * d2:(t + 1) * d2] = _lrelu(
            jnp.dot(h2, w2, preferred_element_type=f32) + b2)

    # output branch: residual with encoder1[step:, -1, :], then line3 + LeakyReLU.
    # Only out[:, -1, :] is returned, so only the final gru3 state is needed.
    enc_res = enc_last[T:, :]                         # (Nw, 12)
    o = _lrelu(jnp.dot(h3 + enc_res, par("w3"), preferred_element_type=f32) + par("b3"))
    out_ref[:, T * d2:T * d2 + 1] = o                 # (Nw, 1)
    out_ref[:, T * d2 + 1:T * d2 + 2] = jnp.full((Nw, 1), kld, f32)   # kld in a spare lane


# ----------------------------------------------------------------------------
# Parameter construction (deterministic synthetic init, PyTorch-like U(-k, k))
# ----------------------------------------------------------------------------
def _uniform(key, shape, k):
    return jax.random.uniform(key, shape, jnp.float32, -k, k)


def init_gru_params(key, input_size, hidden_size):
    """Fused-gate layout [r | z | n], weights stored pre-transposed."""
    k = 1.0 / float(hidden_size) ** 0.5
    H = hidden_size
    kwi, kwh, kbi, kbh = jax.random.split(key, 4)
    wi = _uniform(kwi, (input_size, 3 * H), k)        # [Wir | Wiz | Win]^T
    wh = _uniform(kwh, (H, 3 * H), k)                 # [Whr | Whz | Whn]^T
    bi = _uniform(kbi, (1, 3 * H), k)                 # [b_ir, b_iz, b_in]
    bh = _uniform(kbh, (1, 3 * H), k)                 # [b_hr, b_hz, b_hn]
    # Fold b_hr / b_hz into the input projection; b_hn stays inside r*(...).
    bi_fused = bi + jnp.concatenate([bh[:, :2 * H], jnp.zeros((1, H), jnp.float32)], axis=1)
    return {"wi": wi, "wh": wh, "bi": bi_fused, "bhn": bh[:, 2 * H:]}


def init_linear_params(key, in_f, out_f):
    k = 1.0 / float(in_f) ** 0.5
    kw, kb = jax.random.split(key)
    return {"w": _uniform(kw, (in_f, out_f), k),      # stored pre-transposed
            "b": _uniform(kb, (1, out_f), k)}


def init_gruvae_params(key):
    k1, k2, k3, k4, k5, k6 = jax.random.split(key, 6)
    return {
        "gru1": init_gru_params(k1, 12, 20),
        "line11": init_linear_params(k2, 20, 12),
        "gru2": init_gru_params(k3, 6, 10),
        "line2": init_linear_params(k4, 10, 12),
        "gru3": init_gru_params(k5, 6, 12),
        "line3": init_linear_params(k6, 12, 1),
    }


def pack_gruvae_params(params):
    """Pack all parameters into one (rows, 128) f32 slab (done once, off the hot path)."""
    flat = {
        "wi1": params["gru1"]["wi"], "wh1": params["gru1"]["wh"],
        "bi1": params["gru1"]["bi"], "bhn1": params["gru1"]["bhn"],
        "w11": params["line11"]["w"], "b11": params["line11"]["b"],
        "wi2": params["gru2"]["wi"], "wh2": params["gru2"]["wh"],
        "bi2": params["gru2"]["bi"], "bhn2": params["gru2"]["bhn"],
        "w2": params["line2"]["w"], "b2": params["line2"]["b"],
        "wi3": params["gru3"]["wi"], "wh3": params["gru3"]["wh"],
        "bi3": params["gru3"]["bi"], "bhn3": params["gru3"]["bhn"],
        "w3": params["line3"]["w"], "b3": params["line3"]["b"],
    }
    slab = jnp.zeros((_SLAB_ROWS, 128), jnp.float32)
    for name, (row, r, c) in _PARAM_LAYOUT.items():
        arr = jnp.asarray(flat[name], jnp.float32)
        assert arr.shape == (r, c), (name, arr.shape, (r, c))
        slab = slab.at[row:row + r, :c].set(arr)
    return slab


# ----------------------------------------------------------------------------
# gruvae.forward wrapper (single pallas_call, single output DMA)
# ----------------------------------------------------------------------------
@functools.partial(jax.jit, static_argnums=(2,))
def gruvae_forward(x, param_slab, step, noise_key):
    """x: (B, step, 12). Returns (out (B-step, 1), kld scalar, decoder2 (B-step, step, 12))."""
    B, T, d_in = x.shape
    assert T == step, "module requires seq_len == step (residual shape constraint)"
    Nw = B - step
    d2 = _PARAM_LAYOUT["w2"][2]                       # 12
    width = step * d2 + 2                             # dec2 lanes + out lane + kld lane

    # randn_like replacement (host-side; tiny). In-kernel pltpu.stateful_normal
    # would also remove this dispatch but is kept out for robustness.
    noise = jax.random.normal(noise_key, (B, d_in // 2), jnp.float32)
    # Free, contiguous reshape (no transpose / HBM copy): step t lives at lanes
    # [t*12, (t+1)*12).
    x2d = x.reshape(B, T * d_in).astype(jnp.float32)

    buf = pl.pallas_call(
        functools.partial(_gruvae_kernel, step=step),
        out_shape=jax.ShapeDtypeStruct((Nw, width), jnp.float32),
        in_specs=[_VMEM, _VMEM, _VMEM],
        out_specs=_VMEM,
    )(x2d, noise, param_slab)

    dec2 = buf[:, :step * d2].reshape(Nw, step, d2)   # free reshape (lane-packed store)
    out = buf[:, step * d2:step * d2 + 1]
    kld = buf[0, step * d2 + 1]
    return out, kld, dec2


# ----------------------------------------------------------------------------
if __name__ == "__main__":
    STEP = 4
    BATCH = 12
    FEAT = 12

    root = jax.random.PRNGKey(0)
    k_param, k_x, k_noise = jax.random.split(root, 3)

    params = init_gruvae_params(k_param)
    param_slab = pack_gruvae_params(params)           # single VMEM slab, packed once
    x = jax.random.normal(k_x, (BATCH, STEP, FEAT), jnp.float32)

    out, kld, dec2 = gruvae_forward(x, param_slab, STEP, k_noise)
    jax.block_until_ready((out, kld, dec2))

    assert out.shape == (BATCH - STEP, 1)
    assert kld.shape == ()
    assert dec2.shape == (BATCH - STEP, STEP, 12)
    print("KERNEL_OK")
</pallas_src>

<mosaic_0001>
module attributes {stable_mosaic.version = 11 : i64} {
  func.func @_gruvae_kernel(%arg0: memref<12x48xf32, #tpu.memory_space<vmem>>, %arg1: memref<12x6xf32, #tpu.memory_space<vmem>>, %arg2: memref<216x128xf32, #tpu.memory_space<vmem>>, %arg3: memref<8x50xf32, #tpu.memory_space<vmem>>) attributes {dimension_semantics = [], scalar_prefetch = 0 : i64, scratch_operands = 0 : i64, tpu.core_type = #tpu.core_type<tc>} {
    %c0 = arith.constant 0 : index
    %c0_0 = arith.constant 0 : index
    %0 = vector.load %arg2[%c0, %c0_0] : memref<216x128xf32, #tpu.memory_space<vmem>>, vector<12x60xf32>
    %c16 = arith.constant 16 : index
    %c0_1 = arith.constant 0 : index
    %1 = vector.load %arg2[%c16, %c0_1] : memref<216x128xf32, #tpu.memory_space<vmem>>, vector<20x60xf32>
    %c40 = arith.constant 40 : index
    %c0_2 = arith.constant 0 : index
    %2 = vector.load %arg2[%c40, %c0_2] : memref<216x128xf32, #tpu.memory_space<vmem>>, vector<1x60xf32>
    %c48 = arith.constant 48 : index
    %c0_3 = arith.constant 0 : index
    %3 = vector.load %arg2[%c48, %c0_3] : memref<216x128xf32, #tpu.memory_space<vmem>>, vector<1x20xf32>
    %4 = vector.shape_cast %3 : vector<1x20xf32> to vector<1x20xf32>
    %5 = vector.broadcast %4 : vector<1x20xf32> to vector<12x20xf32>
    %c0_4 = arith.constant 0 : index
    %c0_5 = arith.constant 0 : index
    %6 = vector.load %arg0[%c0_4, %c0_5] : memref<12x48xf32, #tpu.memory_space<vmem>>, vector<12x48xf32>
    %7 = vector.extract_strided_slice %6 {offsets = [0, 0], sizes = [12, 12], strides = [1, 1]} : vector<12x48xf32> to vector<12x12xf32>
    %cst = arith.constant dense<0.000000e+00> : vector<12x60xf32>
    %8 = tpu.matmul %7, %0, %cst {dimension_numbers = #tpu.dot_dimension_numbers<[1], [0], [0], [1], [0, 0, 1, 1], [], []>} : vector<12x12xf32>, vector<12x60xf32>, vector<12x60xf32> -> vector<12x60xf32>
    %9 = vector.broadcast %2 : vector<1x60xf32> to vector<12x60xf32>
    %10 = arith.addf %8, %9 : vector<12x60xf32>
    %11 = vector.extract_strided_slice %6 {offsets = [0, 12], sizes = [12, 12], strides = [1, 1]} : vector<12x48xf32> to vector<12x12xf32>
    %cst_6 = arith.constant dense<0.000000e+00> : vector<12x60xf32>
    %12 = tpu.matmul %11, %0, %cst_6 {dimension_numbers = #tpu.dot_dimension_numbers<[1], [0], [0], [1], [0, 0, 1, 1], [], []>} : vector<12x12xf32>, vector<12x60xf32>, vector<12x60xf32> -> vector<12x60xf32>
    %13 = vector.broadcast %2 : vector<1x60xf32> to vector<12x60xf32>
    %14 = arith.addf %12, %13 : vector<12x60xf32>
    %15 = vector.extract_strided_slice %6 {offsets = [0, 24], sizes = [12, 12], strides = [1, 1]} : vector<12x48xf32> to vector<12x12xf32>
    %cst_7 = arith.constant dense<0.000000e+00> : vector<12x60xf32>
    %16 = tpu.matmul %15, %0, %cst_7 {dimension_numbers = #tpu.dot_dimension_numbers<[1], [0], [0], [1], [0, 0, 1, 1], [], []>} : vector<12x12xf32>, vector<12x60xf32>, vector<12x60xf32> -> vector<12x60xf32>
    %17 = vector.broadcast %2 : vector<1x60xf32> to vector<12x60xf32>
    %18 = arith.addf %16, %17 : vector<12x60xf32>
    %19 = vector.extract_strided_slice %6 {offsets = [0, 36], sizes = [12, 12], strides = [1, 1]} : vector<12x48xf32> to vector<12x12xf32>
    %cst_8 = arith.constant dense<0.000000e+00> : vector<12x60xf32>
    %20 = tpu.matmul %19, %0, %cst_8 {dimension_numbers = #tpu.dot_dimension_numbers<[1], [0], [0], [1], [0, 0, 1, 1], [], []>} : vector<12x12xf32>, vector<12x60xf32>, vector<12x60xf32> -> vector<12x60xf32>
    %21 = vector.broadcast %2 : vector<1x60xf32> to vector<12x60xf32>
    %22 = arith.addf %20, %21 : vector<12x60xf32>
    %cst_9 = arith.constant 0.000000e+00 : f32
    %23 = vector.broadcast %cst_9 : f32 to vector<12x20xf32>
    %cst_10 = arith.constant dense<0.000000e+00> : vector<12x60xf32>
    %24 = tpu.matmul %23, %1, %cst_10 {dimension_numbers = #tpu.dot_dimension_numbers<[1], [0], [0], [1], [0, 0, 1, 1], [], []>} : vector<12x20xf32>, vector<20x60xf32>, vector<12x60xf32> -> vector<12x60xf32>
    %25 = vector.extract_strided_slice %10 {offsets = [0, 0], sizes = [12, 40], strides = [1, 1]} : vector<12x60xf32> to vector<12x40xf32>
    %26 = vector.extract_strided_slice %24 {offsets = [0, 0], sizes = [12, 40], strides = [1, 1]} : vector<12x60xf32> to vector<12x40xf32>
    %27 = arith.addf %25, %26 : vector<12x40xf32>
    %28 = arith.negf %27 : vector<12x40xf32>
    %29 = math.exp %28 : vector<12x40xf32>
    %cst_11 = arith.constant 1.000000e+00 : f32
    %30 = vector.broadcast %cst_11 : f32 to vector<12x40xf32>
    %31 = arith.addf %30, %29 : vector<12x40xf32>
    %32 = arith.divf %30, %31 : vector<12x40xf32>
    %33 = vector.extract_strided_slice %32 {offsets = [0, 0], sizes = [12, 20], strides = [1, 1]} : vector<12x40xf32> to vector<12x20xf32>
    %34 = vector.extract_strided_slice %32 {offsets = [0, 20], sizes = [12, 20], strides = [1, 1]} : vector<12x40xf32> to vector<12x20xf32>
    %35 = vector.extract_strided_slice %10 {offsets = [0, 40], sizes = [12, 20], strides = [1, 1]} : vector<12x60xf32> to vector<12x20xf32>
    %36 = vector.extract_strided_slice %24 {offsets = [0, 40], sizes = [12, 20], strides = [1, 1]} : vector<12x60xf32> to vector<12x20xf32>
    %37 = arith.addf %36, %5 : vector<12x20xf32>
    %38 = arith.mulf %33, %37 : vector<12x20xf32>
    %39 = arith.addf %35, %38 : vector<12x20xf32>
    %40 = math.tanh %39 : vector<12x20xf32>
    %cst_12 = arith.constant 1.000000e+00 : f32
    %41 = vector.broadcast %cst_12 : f32 to vector<12x20xf32>
    %42 = arith.subf %41, %34 : vector<12x20xf32>
    %43 = arith.mulf %42, %40 : vector<12x20xf32>
    %44 = arith.mulf %34, %23 : vector<12x20xf32>
    %45 = arith.addf %43, %44 : vector<12x20xf32>
    %cst_13 = arith.constant dense<0.000000e+00> : vector<12x60xf32>
    %46 = tpu.matmul %45, %1, %cst_13 {dimension_numbers = #tpu.dot_dimension_numbers<[1], [0], [0], [1], [0, 0, 1, 1], [], []>} : vector<12x20xf32>, vector<20x60xf32>, vector<12x60xf32> -> vector<12x60xf32>
    %47 = vector.extract_strided_slice %14 {offsets = [0, 0], sizes = [12, 40], strides = [1, 1]} : vector<12x60xf32> to vector<12x40xf32>
    %48 = vector.extract_strided_slice %46 {offsets = [0, 0], sizes = [12, 40], strides = [1, 1]} : vector<12x60xf32> to vector<12x40xf32>
    %49 = arith.addf %47, %48 : vector<12x40xf32>
    %50 = arith.negf %49 : vector<12x40xf32>
    %51 = math.exp %50 : vector<12x40xf32>
    %cst_14 = arith.constant 1.000000e+00 : f32
    %52 = vector.broadcast %cst_14 : f32 to vector<12x40xf32>
    %53 = arith.addf %52, %51 : vector<12x40xf32>
    %54 = arith.divf %52, %53 : vector<12x40xf32>
    %55 = vector.extract_strided_slice %54 {offsets = [0, 0], sizes = [12, 20], strides = [1, 1]} : vector<12x40xf32> to vector<12x20xf32>
    %56 = vector.extract_strided_slice %54 {offsets = [0, 20], sizes = [12, 20], strides = [1, 1]} : vector<12x40xf32> to vector<12x20xf32>
    %57 = vector.extract_strided_slice %14 {offsets = [0, 40], sizes = [12, 20], strides = [1, 1]} : vector<12x60xf32> to vector<12x20xf32>
    %58 = vector.extract_strided_slice %46 {offsets = [0, 40], sizes = [12, 20], strides = [1, 1]} : vector<12x60xf32> to vector<12x20xf32>
    %59 = arith.addf %58, %5 : vector<12x20xf32>
    %60 = arith.mulf %55, %59 : vector<12x20xf32>
    %61 = arith.addf %57, %60 : vector<12x20xf32>
    %62 = math.tanh %61 : vector<12x20xf32>
    %cst_15 = arith.constant 1.000000e+00 : f32
    %63 = vector.broadcast %cst_15 : f32 to vector<12x20xf32>
    %64 = arith.subf %63, %56 : vector<12x20xf32>
    %65 = arith.mulf %64, %62 : vector<12x20xf32>
    %66 = arith.mulf %56, %45 : vector<12x20xf32>
    %67 = arith.addf %65, %66 : vector<12x20xf32>
    %cst_16 = arith.constant dense<0.000000e+00> : vector<12x60xf32>
    %68 = tpu.matmul %67, %1, %cst_16 {dimension_numbers = #tpu.dot_dimension_numbers<[1], [0], [0], [1], [0, 0, 1, 1], [], []>} : vector<12x20xf32>, vector<20x60xf32>, vector<12x60xf32> -> vector<12x60xf32>
    %69 = vector.extract_strided_slice %18 {offsets = [0, 0], sizes = [12, 40], strides = [1, 1]} : vector<12x60xf32> to vector<12x40xf32>
    %70 = vector.extract_strided_slice %68 {offsets = [0, 0], sizes = [12, 40], strides = [1, 1]} : vector<12x60xf32> to vector<12x40xf32>
    %71 = arith.addf %69, %70 : vector<12x40xf32>
    %72 = arith.negf %71 : vector<12x40xf32>
    %73 = math.exp %72 : vector<12x40xf32>
    %cst_17 = arith.constant 1.000000e+00 : f32
    %74 = vector.broadcast %cst_17 : f32 to vector<12x40xf32>
    %75 = arith.addf %74, %73 : vector<12x40xf32>
    %76 = arith.divf %74, %75 : vector<12x40xf32>
    %77 = vector.extract_strided_slice %76 {offsets = [0, 0], sizes = [12, 20], strides = [1, 1]} : vector<12x40xf32> to vector<12x20xf32>
    %78 = vector.extract_strided_slice %76 {offsets = [0, 20], sizes = [12, 20], strides = [1, 1]} : vector<12x40xf32> to vector<12x20xf32>
    %79 = vector.extract_strided_slice %18 {offsets = [0, 40], sizes = [12, 20], strides = [1, 1]} : vector<12x60xf32> to vector<12x20xf32>
    %80 = vector.extract_strided_slice %68 {offsets = [0, 40], sizes = [12, 20], strides = [1, 1]} : vector<12x60xf32> to vector<12x20xf32>
    %81 = arith.addf %80, %5 : vector<12x20xf32>
    %82 = arith.mulf %77, %81 : vector<12x20xf32>
    %83 = arith.addf %79, %82 : vector<12x20xf32>
    %84 = math.tanh %83 : vector<12x20xf32>
    %cst_18 = arith.constant 1.000000e+00 : f32
    %85 = vector.broadcast %cst_18 : f32 to vector<12x20xf32>
    %86 = arith.subf %85, %78 : vector<12x20xf32>
    %87 = arith.mulf %86, %84 : vector<12x20xf32>
    %88 = arith.mulf %78, %67 : vector<12x20xf32>
    %89 = arith.addf %87, %88 : vector<12x20xf32>
    %cst_19 = arith.constant dense<0.000000e+00> : vector<12x60xf32>
    %90 = tpu.matmul %89, %1, %cst_19 {dimension_numbers = #tpu.dot_dimension_numbers<[1], [0], [0], [1], [0, 0, 1, 1], [], []>} : vector<12x20xf32>, vector<20x60xf32>, vector<12x60xf32> -> vector<12x60xf32>
    %91 = vector.extract_strided_slice %22 {offsets = [0, 0], sizes = [12, 40], strides = [1, 1]} : vector<12x60xf32> to vector<12x40xf32>
    %92 = vector.extract_strided_slice %90 {offsets = [0, 0], sizes = [12, 40], strides = [1, 1]} : vector<12x60xf32> to vector<12x40xf32>
    %93 = arith.addf %91, %92 : vector<12x40xf32>
    %94 = arith.negf %93 : vector<12x40xf32>
    %95 = math.exp %94 : vector<12x40xf32>
    %cst_20 = arith.constant 1.000000e+00 : f32
    %96 = vector.broadcast %cst_20 : f32 to vector<12x40xf32>
    %97 = arith.addf %96, %95 : vector<12x40xf32>
    %98 = arith.divf %96, %97 : vector<12x40xf32>
    %99 = vector.extract_strided_slice %98 {offsets = [0, 0], sizes = [12, 20], strides = [1, 1]} : vector<12x40xf32> to vector<12x20xf32>
    %100 = vector.extract_strided_slice %98 {offsets = [0, 20], sizes = [12, 20], strides = [1, 1]} : vector<12x40xf32> to vector<12x20xf32>
    %101 = vector.extract_strided_slice %22 {offsets = [0, 40], sizes = [12, 20], strides = [1, 1]} : vector<12x60xf32> to vector<12x20xf32>
    %102 = vector.extract_strided_slice %90 {offsets = [0, 40], sizes = [12, 20], strides = [1, 1]} : vector<12x60xf32> to vector<12x20xf32>
    %103 = arith.addf %102, %5 : vector<12x20xf32>
    %104 = arith.mulf %99, %103 : vector<12x20xf32>
    %105 = arith.addf %101, %104 : vector<12x20xf32>
    %106 = math.tanh %105 : vector<12x20xf32>
    %cst_21 = arith.constant 1.000000e+00 : f32
    %107 = vector.broadcast %cst_21 : f32 to vector<12x20xf32>
    %108 = arith.subf %107, %100 : vector<12x20xf32>
    %109 = arith.mulf %108, %106 : vector<12x20xf32>
    %110 = arith.mulf %100, %89 : vector<12x20xf32>
    %111 = arith.addf %109, %110 : vector<12x20xf32>
    %c56 = arith.constant 56 : index
    %c0_22 = arith.constant 0 : index
    %112 = vector.load %arg2[%c56, %c0_22] : memref<216x128xf32, #tpu.memory_space<vmem>>, vector<20x12xf32>
    %cst_23 = arith.constant dense<0.000000e+00> : vector<12x12xf32>
    %113 = tpu.matmul %111, %112, %cst_23 {dimension_numbers = #tpu.dot_dimension_numbers<[1], [0], [0], [1], [0, 0, 1, 1], [], []>} : vector<12x20xf32>, vector<20x12xf32>, vector<12x12xf32> -> vector<12x12xf32>
    %c80 = arith.constant 80 : index
    %c0_24 = arith.constant 0 : index
    %114 = vector.load %arg2[%c80, %c0_24] : memref<216x128xf32, #tpu.memory_space<vmem>>, vector<1x12xf32>
    %115 = vector.broadcast %114 : vector<1x12xf32> to vector<12x12xf32>
    %116 = arith.addf %113, %115 : vector<12x12xf32>
    %cst_25 = arith.constant 0.000000e+00 : f32
    %117 = vector.broadcast %cst_25 : f32 to vector<12x12xf32>
    %118 = arith.cmpf oge, %116, %117 : vector<12x12xf32>
    %cst_26 = arith.constant 5.000000e-01 : f32
    %119 = vector.broadcast %cst_26 : f32 to vector<12x12xf32>
    %120 = arith.mulf %119, %116 : vector<12x12xf32>
    %121 = arith.select %118, %116, %120 : vector<12x12xi1>, vector<12x12xf32>
    %122 = vector.extract_strided_slice %6 {offsets = [0, 36], sizes = [12, 12], strides = [1, 1]} : vector<12x48xf32> to vector<12x12xf32>
    %123 = arith.addf %121, %122 : vector<12x12xf32>
    %124 = vector.extract_strided_slice %123 {offsets = [0, 0], sizes = [12, 6], strides = [1, 1]} : vector<12x12xf32> to vector<12x6xf32>
    %125 = vector.extract_strided_slice %123 {offsets = [0, 6], sizes = [12, 6], strides = [1, 1]} : vector<12x12xf32> to vector<12x6xf32>
    %c0_27 = arith.constant 0 : index
    %c0_28 = arith.constant 0 : index
    %126 = vector.load %arg1[%c0_27, %c0_28] : memref<12x6xf32, #tpu.memory_space<vmem>>, vector<12x6xf32>
    %127 = arith.mulf %125, %126 : vector<12x6xf32>
    %128 = arith.addf %124, %127 : vector<12x6xf32>
    %129 = arith.mulf %125, %125 : vector<12x6xf32>
    %130 = arith.mulf %124, %124 : vector<12x6xf32>
    %131 = arith.addf %130, %129 : vector<12x6xf32>
    %cst_29 = arith.constant 9.99999993E-9 : f32
    %132 = vector.broadcast %cst_29 : f32 to vector<12x6xf32>
    %133 = arith.addf %132, %129 : vector<12x6xf32>
    %134 = math.log %133 : vector<12x6xf32>
    %135 = arith.subf %131, %134 : vector<12x6xf32>
    %cst_30 = arith.constant 1.000000e+00 : f32
    %136 = vector.broadcast %cst_30 : f32 to vector<12x6xf32>
    %137 = arith.subf %135, %136 : vector<12x6xf32>
    %138 = vector.shape_cast %137 : vector<12x6xf32> to vector<1x12x6xf32>
    %cst_31 = arith.constant dense<0.000000e+00> : vector<1xf32>
    %139 = vector.multi_reduction <add>, %138, %cst_31 [1, 2] : vector<1x12x6xf32> to vector<1xf32>
    %140 = vector.shape_cast %139 : vector<1xf32> to vector<1x1x1xf32>
    %141 = vector.extract %140[0, 0, 0] : f32 from vector<1x1x1xf32>
    %cst_32 = arith.constant 0.0416666679 : f32
    %142 = arith.mulf %cst_32, %141 : f32
    %c88 = arith.constant 88 : index
    %c0_33 = arith.constant 0 : index
    %143 = vector.load %arg2[%c88, %c0_33] : memref<216x128xf32, #tpu.memory_space<vmem>>, vector<6x30xf32>
    %c96 = arith.constant 96 : index
    %c0_34 = arith.constant 0 : index
    %144 = vector.load %arg2[%c96, %c0_34] : memref<216x128xf32, #tpu.memory_space<vmem>>, vector<10x30xf32>
    %c152 = arith.constant 152 : index
    %c0_35 = arith.constant 0 : index
    %145 = vector.load %arg2[%c152, %c0_35] : memref<216x128xf32, #tpu.memory_space<vmem>>, vector<6x36xf32>
    %c160 = arith.constant 160 : index
    %c0_36 = arith.constant 0 : index
    %146 = vector.load %arg2[%c160, %c0_36] : memref<216x128xf32, #tpu.memory_space<vmem>>, vector<12x36xf32>
    %cst_37 = arith.constant dense<0.000000e+00> : vector<12x30xf32>
    %147 = tpu.matmul %128, %143, %cst_37 {dimension_numbers = #tpu.dot_dimension_numbers<[1], [0], [0], [1], [0, 0, 1, 1], [], []>} : vector<12x6xf32>, vector<6x30xf32>, vector<12x30xf32> -> vector<12x30xf32>
    %c112 = arith.constant 112 : index
    %c0_38 = arith.constant 0 : index
    %148 = vector.load %arg2[%c112, %c0_38] : memref<216x128xf32, #tpu.memory_space<vmem>>, vector<1x30xf32>
    %149 = vector.broadcast %148 : vector<1x30xf32> to vector<12x30xf32>
    %150 = arith.addf %147, %149 : vector<12x30xf32>
    %cst_39 = arith.constant dense<0.000000e+00> : vector<12x36xf32>
    %151 = tpu.matmul %128, %145, %cst_39 {dimension_numbers = #tpu.dot_dimension_numbers<[1], [0], [0], [1], [0, 0, 1, 1], [], []>} : vector<12x6xf32>, vector<6x36xf32>, vector<12x36xf32> -> vector<12x36xf32>
    %c176 = arith.constant 176 : index
    %c0_40 = arith.constant 0 : index
    %152 = vector.load %arg2[%c176, %c0_40] : memref<216x128xf32, #tpu.memory_space<vmem>>, vector<1x36xf32>
    %153 = vector.broadcast %152 : vector<1x36xf32> to vector<12x36xf32>
    %154 = arith.addf %151, %153 : vector<12x36xf32>
    %c120 = arith.constant 120 : index
    %c0_41 = arith.constant 0 : index
    %155 = vector.load %arg2[%c120, %c0_41] : memref<216x128xf32, #tpu.memory_space<vmem>>, vector<1x10xf32>
    %156 = vector.shape_cast %155 : vector<1x10xf32> to vector<1x10xf32>
    %157 = vector.broadcast %156 : vector<1x10xf32> to vector<8x10xf32>
    %c184 = arith.constant 184 : index
    %c0_42 = arith.constant 0 : index
    %158 = vector.load %arg2[%c184, %c0_42] : memref<216x128xf32, #tpu.memory_space<vmem>>, vector<1x12xf32>
    %159 = vector.shape_cast %158 : vector<1x12xf32> to vector<1x12xf32>
    %160 = vector.broadcast %159 : vector<1x12xf32> to vector<8x12xf32>
    %c128 = arith.constant 128 : index
    %c0_43 = arith.constant 0 : index
    %161 = vector.load %arg2[%c128, %c0_43] : memref<216x128xf32, #tpu.memory_space<vmem>>, vector<10x12xf32>
    %c144 = arith.constant 144 : index
    %c0_44 = arith.constant 0 : index
    %162 = vector.load %arg2[%c144, %c0_44] : memref<216x128xf32, #tpu.memory_space<vmem>>, vector<1x12xf32>
    %163 = vector.shape_cast %162 : vector<1x12xf32> to vector<1x12xf32>
    %164 = vector.broadcast %163 : vector<1x12xf32> to vector<8x12xf32>
    %cst_45 = arith.constant 0.000000e+00 : f32
    %165 = vector.broadcast %cst_45 : f32 to vector<8x10xf32>
    %cst_46 = arith.constant 0.000000e+00 : f32
    %166 = vector.broadcast %cst_46 : f32 to vector<8x12xf32>
    %167 = vector.extract_strided_slice %150 {offsets = [0, 0], sizes = [8, 30], strides = [1, 1]} : vector<12x30xf32> to vector<8x30xf32>
    %168 = vector.extract_strided_slice %154 {offsets = [0, 0], sizes = [8, 36], strides = [1, 1]} : vector<12x36xf32> to vector<8x36xf32>
    %cst_47 = arith.constant dense<0.000000e+00> : vector<8x30xf32>
    %169 = tpu.matmul %165, %144, %cst_47 {dimension_numbers = #tpu.dot_dimension_numbers<[1], [0], [0], [1], [0, 0, 1, 1], [], []>} : vector<8x10xf32>, vector<10x30xf32>, vector<8x30xf32> -> vector<8x30xf32>
    %170 = vector.extract_strided_slice %167 {offsets = [0, 0], sizes = [8, 20], strides = [1, 1]} : vector<8x30xf32> to vector<8x20xf32>
    %171 = vector.extract_strided_slice %169 {offsets = [0, 0], sizes = [8, 20], strides = [1, 1]} : vector<8x30xf32> to vector<8x20xf32>
    %172 = arith.addf %170, %171 : vector<8x20xf32>
    %173 = arith.negf %172 : vector<8x20xf32>
    %174 = math.exp %173 : vector<8x20xf32>
    %cst_48 = arith.constant 1.000000e+00 : f32
    %175 = vector.broadcast %cst_48 : f32 to vector<8x20xf32>
    %176 = arith.addf %175, %174 : vector<8x20xf32>
    %177 = arith.divf %175, %176 : vector<8x20xf32>
    %178 = vector.extract_strided_slice %177 {offsets = [0, 0], sizes = [8, 10], strides = [1, 1]} : vector<8x20xf32> to vector<8x10xf32>
    %179 = vector.extract_strided_slice %177 {offsets = [0, 10], sizes = [8, 10], strides = [1, 1]} : vector<8x20xf32> to vector<8x10xf32>
    %180 = vector.extract_strided_slice %167 {offsets = [0, 20], sizes = [8, 10], strides = [1, 1]} : vector<8x30xf32> to vector<8x10xf32>
    %181 = vector.extract_strided_slice %169 {offsets = [0, 20], sizes = [8, 10], strides = [1, 1]} : vector<8x30xf32> to vector<8x10xf32>
    %182 = arith.addf %181, %157 : vector<8x10xf32>
    %183 = arith.mulf %178, %182 : vector<8x10xf32>
    %184 = arith.addf %180, %183 : vector<8x10xf32>
    %185 = math.tanh %184 : vector<8x10xf32>
    %cst_49 = arith.constant 1.000000e+00 : f32
    %186 = vector.broadcast %cst_49 : f32 to vector<8x10xf32>
    %187 = arith.subf %186, %179 : vector<8x10xf32>
    %188 = arith.mulf %187, %185 : vector<8x10xf32>
    %189 = arith.mulf %179, %165 : vector<8x10xf32>
    %190 = arith.addf %188, %189 : vector<8x10xf32>
    %cst_50 = arith.constant dense<0.000000e+00> : vector<8x36xf32>
    %191 = tpu.matmul %166, %146, %cst_50 {dimension_numbers = #tpu.dot_dimension_numbers<[1], [0], [0], [1], [0, 0, 1, 1], [], []>} : vector<8x12xf32>, vector<12x36xf32>, vector<8x36xf32> -> vector<8x36xf32>
    %192 = vector.extract_strided_slice %168 {offsets = [0, 0], sizes = [8, 24], strides = [1, 1]} : vector<8x36xf32> to vector<8x24xf32>
    %193 = vector.extract_strided_slice %191 {offsets = [0, 0], sizes = [8, 24], strides = [1, 1]} : vector<8x36xf32> to vector<8x24xf32>
    %194 = arith.addf %192, %193 : vector<8x24xf32>
    %195 = arith.negf %194 : vector<8x24xf32>
    %196 = math.exp %195 : vector<8x24xf32>
    %cst_51 = arith.constant 1.000000e+00 : f32
    %197 = vector.broadcast %cst_51 : f32 to vector<8x24xf32>
    %198 = arith.addf %197, %196 : vector<8x24xf32>
    %199 = arith.divf %197, %198 : vector<8x24xf32>
    %200 = vector.extract_strided_slice %199 {offsets = [0, 0], sizes = [8, 12], strides = [1, 1]} : vector<8x24xf32> to vector<8x12xf32>
    %201 = vector.extract_strided_slice %199 {offsets = [0, 12], sizes = [8, 12], strides = [1, 1]} : vector<8x24xf32> to vector<8x12xf32>
    %202 = vector.extract_strided_slice %168 {offsets = [0, 24], sizes = [8, 12], strides = [1, 1]} : vector<8x36xf32> to vector<8x12xf32>
    %203 = vector.extract_strided_slice %191 {offsets = [0, 24], sizes = [8, 12], strides = [1, 1]} : vector<8x36xf32> to vector<8x12xf32>
    %204 = arith.addf %203, %160 : vector<8x12xf32>
    %205 = arith.mulf %200, %204 : vector<8x12xf32>
    %206 = arith.addf %202, %205 : vector<8x12xf32>
    %207 = math.tanh %206 : vector<8x12xf32>
    %cst_52 = arith.constant 1.000000e+00 : f32
    %208 = vector.broadcast %cst_52 : f32 to vector<8x12xf32>
    %209 = arith.subf %208, %201 : vector<8x12xf32>
    %210 = arith.mulf %209, %207 : vector<8x12xf32>
    %211 = arith.mulf %201, %166 : vector<8x12xf32>
    %212 = arith.addf %210, %211 : vector<8x12xf32>
    %cst_53 = arith.constant dense<0.000000e+00> : vector<8x12xf32>
    %213 = tpu.matmul %190, %161, %cst_53 {dimension_numbers = #tpu.dot_dimension_numbers<[1], [0], [0], [1], [0, 0, 1, 1], [], []>} : vector<8x10xf32>, vector<10x12xf32>, vector<8x12xf32> -> vector<8x12xf32>
    %214 = arith.addf %213, %164 : vector<8x12xf32>
    %cst_54 = arith.constant 0.000000e+00 : f32
    %215 = vector.broadcast %cst_54 : f32 to vector<8x12xf32>
    %216 = arith.cmpf oge, %214, %215 : vector<8x12xf32>
    %cst_55 = arith.constant 5.000000e-01 : f32
    %217 = vector.broadcast %cst_55 : f32 to vector<8x12xf32>
    %218 = arith.mulf %217, %214 : vector<8x12xf32>
    %219 = arith.select %216, %214, %218 : vector<8x12xi1>, vector<8x12xf32>
    %c0_56 = arith.constant 0 : index
    %c0_57 = arith.constant 0 : index
    %220 = vector.load %arg3[%c0_56, %c0_57] : memref<8x50xf32, #tpu.memory_space<vmem>>, vector<8x12xf32>
    tpu.vector_store %arg3[%c0_56, %c0_57], %219 {strides = array<i32>} : memref<8x50xf32, #tpu.memory_space<vmem>>, vector<8x12xf32>,
    %221 = vector.extract_strided_slice %150 {offsets = [1, 0], sizes = [8, 30], strides = [1, 1]} : vector<12x30xf32> to vector<8x30xf32>
    %222 = vector.extract_strided_slice %154 {offsets = [1, 0], sizes = [8, 36], strides = [1, 1]} : vector<12x36xf32> to vector<8x36xf32>
    %cst_58 = arith.constant dense<0.000000e+00> : vector<8x30xf32>
    %223 = tpu.matmul %190, %144, %cst_58 {dimension_numbers = #tpu.dot_dimension_numbers<[1], [0], [0], [1], [0, 0, 1, 1], [], []>} : vector<8x10xf32>, vector<10x30xf32>, vector<8x30xf32> -> vector<8x30xf32>
    %224 = vector.extract_strided_slice %221 {offsets = [0, 0], sizes = [8, 20], strides = [1, 1]} : vector<8x30xf32> to vector<8x20xf32>
    %225 = vector.extract_strided_slice %223 {offsets = [0, 0], sizes = [8, 20], strides = [1, 1]} : vector<8x30xf32> to vector<8x20xf32>
    %226 = arith.addf %224, %225 : vector<8x20xf32>
    %227 = arith.negf %226 : vector<8x20xf32>
    %228 = math.exp %227 : vector<8x20xf32>
    %cst_59 = arith.constant 1.000000e+00 : f32
    %229 = vector.broadcast %cst_59 : f32 to vector<8x20xf32>
    %230 = arith.addf %229, %228 : vector<8x20xf32>
    %231 = arith.divf %229, %230 : vector<8x20xf32>
    %232 = vector.extract_strided_slice %231 {offsets = [0, 0], sizes = [8, 10], strides = [1, 1]} : vector<8x20xf32> to vector<8x10xf32>
    %233 = vector.extract_strided_slice %231 {offsets = [0, 10], sizes = [8, 10], strides = [1, 1]} : vector<8x20xf32> to vector<8x10xf32>
    %234 = vector.extract_strided_slice %221 {offsets = [0, 20], sizes = [8, 10], strides = [1, 1]} : vector<8x30xf32> to vector<8x10xf32>
    %235 = vector.extract_strided_slice %223 {offsets = [0, 20], sizes = [8, 10], strides = [1, 1]} : vector<8x30xf32> to vector<8x10xf32>
    %236 = arith.addf %235, %157 : vector<8x10xf32>
    %237 = arith.mulf %232, %236 : vector<8x10xf32>
    %238 = arith.addf %234, %237 : vector<8x10xf32>
    %239 = math.tanh %238 : vector<8x10xf32>
    %cst_60 = arith.constant 1.000000e+00 : f32
    %240 = vector.broadcast %cst_60 : f32 to vector<8x10xf32>
    %241 = arith.subf %240, %233 : vector<8x10xf32>
    %242 = arith.mulf %241, %239 : vector<8x10xf32>
    %243 = arith.mulf %233, %190 : vector<8x10xf32>
    %244 = arith.addf %242, %243 : vector<8x10xf32>
    %cst_61 = arith.constant dense<0.000000e+00> : vector<8x36xf32>
    %245 = tpu.matmul %212, %146, %cst_61 {dimension_numbers = #tpu.dot_dimension_numbers<[1], [0], [0], [1], [0, 0, 1, 1], [], []>} : vector<8x12xf32>, vector<12x36xf32>, vector<8x36xf32> -> vector<8x36xf32>
    %246 = vector.extract_strided_slice %222 {offsets = [0, 0], sizes = [8, 24], strides = [1, 1]} : vector<8x36xf32> to vector<8x24xf32>
    %247 = vector.extract_strided_slice %245 {offsets = [0, 0], sizes = [8, 24], strides = [1, 1]} : vector<8x36xf32> to vector<8x24xf32>
    %248 = arith.addf %246, %247 : vector<8x24xf32>
    %249 = arith.negf %248 : vector<8x24xf32>
    %250 = math.exp %249 : vector<8x24xf32>
    %cst_62 = arith.constant 1.000000e+00 : f32
    %251 = vector.broadcast %cst_62 : f32 to vector<8x24xf32>
    %252 = arith.addf %251, %250 : vector<8x24xf32>
    %253 = arith.divf %251, %252 : vector<8x24xf32>
    %254 = vector.extract_strided_slice %253 {offsets = [0, 0], sizes = [8, 12], strides = [1, 1]} : vector<8x24xf32> to vector<8x12xf32>
    %255 = vector.extract_strided_slice %253 {offsets = [0, 12], sizes = [8, 12], strides = [1, 1]} : vector<8x24xf32> to vector<8x12xf32>
    %256 = vector.extract_strided_slice %222 {offsets = [0, 24], sizes = [8, 12], strides = [1, 1]} : vector<8x36xf32> to vector<8x12xf32>
    %257 = vector.extract_strided_slice %245 {offsets = [0, 24], sizes = [8, 12], strides = [1, 1]} : vector<8x36xf32> to vector<8x12xf32>
    %258 = arith.addf %257, %160 : vector<8x12xf32>
    %259 = arith.mulf %254, %258 : vector<8x12xf32>
    %260 = arith.addf %256, %259 : vector<8x12xf32>
    %261 = math.tanh %260 : vector<8x12xf32>
    %cst_63 = arith.constant 1.000000e+00 : f32
    %262 = vector.broadcast %cst_63 : f32 to vector<8x12xf32>
    %263 = arith.subf %262, %255 : vector<8x12xf32>
    %264 = arith.mulf %263, %261 : vector<8x12xf32>
    %265 = arith.mulf %255, %212 : vector<8x12xf32>
    %266 = arith.addf %264, %265 : vector<8x12xf32>
    %cst_64 = arith.constant dense<0.000000e+00> : vector<8x12xf32>
    %267 = tpu.matmul %244, %161, %cst_64 {dimension_numbers = #tpu.dot_dimension_numbers<[1], [0], [0], [1], [0, 0, 1, 1], [], []>} : vector<8x10xf32>, vector<10x12xf32>, vector<8x12xf32> -> vector<8x12xf32>
    %268 = arith.addf %267, %164 : vector<8x12xf32>
    %cst_65 = arith.constant 0.000000e+00 : f32
    %269 = vector.broadcast %cst_65 : f32 to vector<8x12xf32>
    %270 = arith.cmpf oge, %268, %269 : vector<8x12xf32>
    %cst_66 = arith.constant 5.000000e-01 : f32
    %271 = vector.broadcast %cst_66 : f32 to vector<8x12xf32>
    %272 = arith.mulf %271, %268 : vector<8x12xf32>
    %273 = arith.select %270, %268, %272 : vector<8x12xi1>, vector<8x12xf32>
    %c0_67 = arith.constant 0 : index
    %c12 = arith.constant 12 : index
    %274 = vector.load %arg3[%c0_67, %c12] : memref<8x50xf32, #tpu.memory_space<vmem>>, vector<8x12xf32>
    tpu.vector_store %arg3[%c0_67, %c12], %273 {strides = array<i32>} : memref<8x50xf32, #tpu.memory_space<vmem>>, vector<8x12xf32>,
    %275 = vector.extract_strided_slice %150 {offsets = [2, 0], sizes = [8, 30], strides = [1, 1]} : vector<12x30xf32> to vector<8x30xf32>
    %276 = vector.extract_strided_slice %154 {offsets = [2, 0], sizes = [8, 36], strides = [1, 1]} : vector<12x36xf32> to vector<8x36xf32>
    %cst_68 = arith.constant dense<0.000000e+00> : vector<8x30xf32>
    %277 = tpu.matmul %244, %144, %cst_68 {dimension_numbers = #tpu.dot_dimension_numbers<[1], [0], [0], [1], [0, 0, 1, 1], [], []>} : vector<8x10xf32>, vector<10x30xf32>, vector<8x30xf32> -> vector<8x30xf32>
    %278 = vector.extract_strided_slice %275 {offsets = [0, 0], sizes = [8, 20], strides = [1, 1]} : vector<8x30xf32> to vector<8x20xf32>
    %279 = vector.extract_strided_slice %277 {offsets = [0, 0], sizes = [8, 20], strides = [1, 1]} : vector<8x30xf32> to vector<8x20xf32>
    %280 = arith.addf %278, %279 : vector<8x20xf32>
    %281 = arith.negf %280 : vector<8x20xf32>
    %282 = math.exp %281 : vector<8x20xf32>
    %cst_69 = arith.constant 1.000000e+00 : f32
    %283 = vector.broadcast %cst_69 : f32 to vector<8x20xf32>
    %284 = arith.addf %283, %282 : vector<8x20xf32>
    %285 = arith.divf %283, %284 : vector<8x20xf32>
    %286 = vector.extract_strided_slice %285 {offsets = [0, 0], sizes = [8, 10], strides = [1, 1]} : vector<8x20xf32> to vector<8x10xf32>
    %287 = vector.extract_strided_slice %285 {offsets = [0, 10], sizes = [8, 10], strides = [1, 1]} : vector<8x20xf32> to vector<8x10xf32>
    %288 = vector.extract_strided_slice %275 {offsets = [0, 20], sizes = [8, 10], strides = [1, 1]} : vector<8x30xf32> to vector<8x10xf32>
    %289 = vector.extract_strided_slice %277 {offsets = [0, 20], sizes = [8, 10], strides = [1, 1]} : vector<8x30xf32> to vector<8x10xf32>
    %290 = arith.addf %289, %157 : vector<8x10xf32>
    %291 = arith.mulf %286, %290 : vector<8x10xf32>
    %292 = arith.addf %288, %291 : vector<8x10xf32>
    %293 = math.tanh %292 : vector<8x10xf32>
    %cst_70 = arith.constant 1.000000e+00 : f32
    %294 = vector.broadcast %cst_70 : f32 to vector<8x10xf32>
    %295 = arith.subf %294, %287 : vector<8x10xf32>
    %296 = arith.mulf %295, %293 : vector<8x10xf32>
    %297 = arith.mulf %287, %244 : vector<8x10xf32>
    %298 = arith.addf %296, %297 : vector<8x10xf32>
    %cst_71 = arith.constant dense<0.000000e+00> : vector<8x36xf32>
    %299 = tpu.matmul %266, %146, %cst_71 {dimension_numbers = #tpu.dot_dimension_numbers<[1], [0], [0], [1], [0, 0, 1, 1], [], []>} : vector<8x12xf32>, vector<12x36xf32>, vector<8x36xf32> -> vector<8x36xf32>
    %300 = vector.extract_strided_slice %276 {offsets = [0, 0], sizes = [8, 24], strides = [1, 1]} : vector<8x36xf32> to vector<8x24xf32>
    %301 = vector.extract_strided_slice %299 {offsets = [0, 0], sizes = [8, 24], strides = [1, 1]} : vector<8x36xf32> to vector<8x24xf32>
    %302 = arith.addf %300, %301 : vector<8x24xf32>
    %303 = arith.negf %302 : vector<8x24xf32>
    %304 = math.exp %303 : vector<8x24xf32>
    %cst_72 = arith.constant 1.000000e+00 : f32
    %305 = vector.broadcast %cst_72 : f32 to vector<8x24xf32>
    %306 = arith.addf %305, %304 : vector<8x24xf32>
    %307 = arith.divf %305, %306 : vector<8x24xf32>
    %308 = vector.extract_strided_slice %307 {offsets = [0, 0], sizes = [8, 12], strides = [1, 1]} : vector<8x24xf32> to vector<8x12xf32>
    %309 = vector.extract_strided_slice %307 {offsets = [0, 12], sizes = [8, 12], strides = [1, 1]} : vector<8x24xf32> to vector<8x12xf32>
    %310 = vector.extract_strided_slice %276 {offsets = [0, 24], sizes = [8, 12], strides = [1, 1]} : vector<8x36xf32> to vector<8x12xf32>
    %311 = vector.extract_strided_slice %299 {offsets = [0, 24], sizes = [8, 12], strides = [1, 1]} : vector<8x36xf32> to vector<8x12xf32>
    %312 = arith.addf %311, %160 : vector<8x12xf32>
    %313 = arith.mulf %308, %312 : vector<8x12xf32>
    %314 = arith.addf %310, %313 : vector<8x12xf32>
    %315 = math.tanh %314 : vector<8x12xf32>
    %cst_73 = arith.constant 1.000000e+00 : f32
    %316 = vector.broadcast %cst_73 : f32 to vector<8x12xf32>
    %317 = arith.subf %316, %309 : vector<8x12xf32>
    %318 = arith.mulf %317, %315 : vector<8x12xf32>
    %319 = arith.mulf %309, %266 : vector<8x12xf32>
    %320 = arith.addf %318, %319 : vector<8x12xf32>
    %cst_74 = arith.constant dense<0.000000e+00> : vector<8x12xf32>
    %321 = tpu.matmul %298, %161, %cst_74 {dimension_numbers = #tpu.dot_dimension_numbers<[1], [0], [0], [1], [0, 0, 1, 1], [], []>} : vector<8x10xf32>, vector<10x12xf32>, vector<8x12xf32> -> vector<8x12xf32>
    %322 = arith.addf %321, %164 : vector<8x12xf32>
    %cst_75 = arith.constant 0.000000e+00 : f32
    %323 = vector.broadcast %cst_75 : f32 to vector<8x12xf32>
    %324 = arith.cmpf oge, %322, %323 : vector<8x12xf32>
    %cst_76 = arith.constant 5.000000e-01 : f32
    %325 = vector.broadcast %cst_76 : f32 to vector<8x12xf32>
    %326 = arith.mulf %325, %322 : vector<8x12xf32>
    %327 = arith.select %324, %322, %326 : vector<8x12xi1>, vector<8x12xf32>
    %c0_77 = arith.constant 0 : index
    %c24 = arith.constant 24 : index
    %328 = vector.load %arg3[%c0_77, %c24] : memref<8x50xf32, #tpu.memory_space<vmem>>, vector<8x12xf32>
    tpu.vector_store %arg3[%c0_77, %c24], %327 {strides = array<i32>} : memref<8x50xf32, #tpu.memory_space<vmem>>, vector<8x12xf32>,
    %329 = vector.extract_strided_slice %150 {offsets = [3, 0], sizes = [8, 30], strides = [1, 1]} : vector<12x30xf32> to vector<8x30xf32>
    %330 = vector.extract_strided_slice %154 {offsets = [3, 0], sizes = [8, 36], strides = [1, 1]} : vector<12x36xf32> to vector<8x36xf32>
    %cst_78 = arith.constant dense<0.000000e+00> : vector<8x30xf32>
    %331 = tpu.matmul %298, %144, %cst_78 {dimension_numbers = #tpu.dot_dimension_numbers<[1], [0], [0], [1], [0, 0, 1, 1], [], []>} : vector<8x10xf32>, vector<10x30xf32>, vector<8x30xf32> -> vector<8x30xf32>
    %332 = vector.extract_strided_slice %329 {offsets = [0, 0], sizes = [8, 20], strides = [1, 1]} : vector<8x30xf32> to vector<8x20xf32>
    %333 = vector.extract_strided_slice %331 {offsets = [0, 0], sizes = [8, 20], strides = [1, 1]} : vector<8x30xf32> to vector<8x20xf32>
    %334 = arith.addf %332, %333 : vector<8x20xf32>
    %335 = arith.negf %334 : vector<8x20xf32>
    %336 = math.exp %335 : vector<8x20xf32>
    %cst_79 = arith.constant 1.000000e+00 : f32
    %337 = vector.broadcast %cst_79 : f32 to vector<8x20xf32>
    %338 = arith.addf %337, %336 : vector<8x20xf32>
    %339 = arith.divf %337, %338 : vector<8x20xf32>
    %340 = vector.extract_strided_slice %339 {offsets = [0, 0], sizes = [8, 10], strides = [1, 1]} : vector<8x20xf32> to vector<8x10xf32>
    %341 = vector.extract_strided_slice %339 {offsets = [0, 10], sizes = [8, 10], strides = [1, 1]} : vector<8x20xf32> to vector<8x10xf32>
    %342 = vector.extract_strided_slice %329 {offsets = [0, 20], sizes = [8, 10], strides = [1, 1]} : vector<8x30xf32> to vector<8x10xf32>
    %343 = vector.extract_strided_slice %331 {offsets = [0, 20], sizes = [8, 10], strides = [1, 1]} : vector<8x30xf32> to vector<8x10xf32>
    %344 = arith.addf %343, %157 : vector<8x10xf32>
    %345 = arith.mulf %340, %344 : vector<8x10xf32>
    %346 = arith.addf %342, %345 : vector<8x10xf32>
    %347 = math.tanh %346 : vector<8x10xf32>
    %cst_80 = arith.constant 1.000000e+00 : f32
    %348 = vector.broadcast %cst_80 : f32 to vector<8x10xf32>
    %349 = arith.subf %348, %341 : vector<8x10xf32>
    %350 = arith.mulf %349, %347 : vector<8x10xf32>
    %351 = arith.mulf %341, %298 : vector<8x10xf32>
    %352 = arith.addf %350, %351 : vector<8x10xf32>
    %cst_81 = arith.constant dense<0.000000e+00> : vector<8x36xf32>
    %353 = tpu.matmul %320, %146, %cst_81 {dimension_numbers = #tpu.dot_dimension_numbers<[1], [0], [0], [1], [0, 0, 1, 1], [], []>} : vector<8x12xf32>, vector<12x36xf32>, vector<8x36xf32> -> vector<8x36xf32>
    %354 = vector.extract_strided_slice %330 {offsets = [0, 0], sizes = [8, 24], strides = [1, 1]} : vector<8x36xf32> to vector<8x24xf32>
    %355 = vector.extract_strided_slice %353 {offsets = [0, 0], sizes = [8, 24], strides = [1, 1]} : vector<8x36xf32> to vector<8x24xf32>
    %356 = arith.addf %354, %355 : vector<8x24xf32>
    %357 = arith.negf %356 : vector<8x24xf32>
    %358 = math.exp %357 : vector<8x24xf32>
    %cst_82 = arith.constant 1.000000e+00 : f32
    %359 = vector.broadcast %cst_82 : f32 to vector<8x24xf32>
    %360 = arith.addf %359, %358 : vector<8x24xf32>
    %361 = arith.divf %359, %360 : vector<8x24xf32>
    %362 = vector.extract_strided_slice %361 {offsets = [0, 0], sizes = [8, 12], strides = [1, 1]} : vector<8x24xf32> to vector<8x12xf32>
    %363 = vector.extract_strided_slice %361 {offsets = [0, 12], sizes = [8, 12], strides = [1, 1]} : vector<8x24xf32> to vector<8x12xf32>
    %364 = vector.extract_strided_slice %330 {offsets = [0, 24], sizes = [8, 12], strides = [1, 1]} : vector<8x36xf32> to vector<8x12xf32>
    %365 = vector.extract_strided_slice %353 {offsets = [0, 24], sizes = [8, 12], strides = [1, 1]} : vector<8x36xf32> to vector<8x12xf32>
    %366 = arith.addf %365, %160 : vector<8x12xf32>
    %367 = arith.mulf %362, %366 : vector<8x12xf32>
    %368 = arith.addf %364, %367 : vector<8x12xf32>
    %369 = math.tanh %368 : vector<8x12xf32>
    %cst_83 = arith.constant 1.000000e+00 : f32
    %370 = vector.broadcast %cst_83 : f32 to vector<8x12xf32>
    %371 = arith.subf %370, %363 : vector<8x12xf32>
    %372 = arith.mulf %371, %369 : vector<8x12xf32>
    %373 = arith.mulf %363, %320 : vector<8x12xf32>
    %374 = arith.addf %372, %373 : vector<8x12xf32>
    %cst_84 = arith.constant dense<0.000000e+00> : vector<8x12xf32>
    %375 = tpu.matmul %352, %161, %cst_84 {dimension_numbers = #tpu.dot_dimension_numbers<[1], [0], [0], [1], [0, 0, 1, 1], [], []>} : vector<8x10xf32>, vector<10x12xf32>, vector<8x12xf32> -> vector<8x12xf32>
    %376 = arith.addf %375, %164 : vector<8x12xf32>
    %cst_85 = arith.constant 0.000000e+00 : f32
    %377 = vector.broadcast %cst_85 : f32 to vector<8x12xf32>
    %378 = arith.cmpf oge, %376, %377 : vector<8x12xf32>
    %cst_86 = arith.constant 5.000000e-01 : f32
    %379 = vector.broadcast %cst_86 : f32 to vector<8x12xf32>
    %380 = arith.mulf %379, %376 : vector<8x12xf32>
    %381 = arith.select %378, %376, %380 : vector<8x12xi1>, vector<8x12xf32>
    %c0_87 = arith.constant 0 : index
    %c36 = arith.constant 36 : index
    %382 = vector.load %arg3[%c0_87, %c36] : memref<8x50xf32, #tpu.memory_space<vmem>>, vector<8x12xf32>
    tpu.vector_store %arg3[%c0_87, %c36], %381 {strides = array<i32>} : memref<8x50xf32, #tpu.memory_space<vmem>>, vector<8x12xf32>,
    %383 = vector.extract_strided_slice %123 {offsets = [4, 0], sizes = [8, 12], strides = [1, 1]} : vector<12x12xf32> to vector<8x12xf32>
    %384 = arith.addf %374, %383 : vector<8x12xf32>
    %c192 = arith.constant 192 : index
    %c0_88 = arith.constant 0 : index
    %385 = vector.load %arg2[%c192, %c0_88] : memref<216x128xf32, #tpu.memory_space<vmem>>, vector<12x1xf32>
    %cst_89 = arith.constant dense<0.000000e+00> : vector<8x1xf32>
    %386 = tpu.matmul %384, %385, %cst_89 {dimension_numbers = #tpu.dot_dimension_numbers<[1], [0], [0], [1], [0, 0, 1, 1], [], []>} : vector<8x12xf32>, vector<12x1xf32>, vector<8x1xf32> -> vector<8x1xf32>
    %c208 = arith.constant 208 : index
    %c0_90 = arith.constant 0 : index
    %387 = vector.load %arg2[%c208, %c0_90] : memref<216x128xf32, #tpu.memory_space<vmem>>, vector<1x1xf32>
    %388 = vector.broadcast %387 : vector<1x1xf32> to vector<8x1xf32>
    %389 = arith.addf %386, %388 : vector<8x1xf32>
    %cst_91 = arith.constant 0.000000e+00 : f32
    %390 = vector.broadcast %cst_91 : f32 to vector<8x1xf32>
    %391 = arith.cmpf oge, %389, %390 : vector<8x1xf32>
    %cst_92 = arith.constant 5.000000e-01 : f32
    %392 = vector.broadcast %cst_92 : f32 to vector<8x1xf32>
    %393 = arith.mulf %392, %389 : vector<8x1xf32>
    %394 = arith.select %391, %389, %393 : vector<8x1xi1>, vector<8x1xf32>
    %c0_93 = arith.constant 0 : index
    %c48_94 = arith.constant 48 : index
    %395 = vector.load %arg3[%c0_93, %c48_94] : memref<8x50xf32, #tpu.memory_space<vmem>>, vector<8x1xf32>
    tpu.vector_store %arg3[%c0_93, %c48_94], %394 {strides = array<i32>} : memref<8x50xf32, #tpu.memory_space<vmem>>, vector<8x1xf32>,
    %396 = vector.broadcast %142 : f32 to vector<8x1xf32>
    %c0_95 = arith.constant 0 : index
    %c49 = arith.constant 49 : index
    %397 = vector.load %arg3[%c0_95, %c49] : memref<8x50xf32, #tpu.memory_space<vmem>>, vector<8x1xf32>
    tpu.vector_store %arg3[%c0_95, %c49], %396 {strides = array<i32>} : memref<8x50xf32, #tpu.memory_space<vmem>>, vector<8x1xf32>,
    return
  }
}

</mosaic_0001>

<llo_original>
// kernel: gruvae_forward.1
$region0: #{gruvae_forward.1}
  #allocation0 [shape = 'u32[]', space=smem, size = 0x4, offset = 0x4, fixed_abs, tag = 'smem constant byte address 0x4 - core index']
  #allocation1 [shape = 'u32[72,128]{1,0:T(1,128)}', space=vmem, size = 0x9000, scoped, tag = 'internal scratch']
  %s0 = inlined_call_operand.vmem [shape: f32[12,48], index: 0, kind: input, shape index: {}]
  %s1 = inlined_call_operand.vmem [shape: f32[12,6], index: 1, kind: input, shape index: {}]
  %s2 = inlined_call_operand.hbm [shape: f32[216,128], index: 2, kind: input, shape index: {}]
  %s3 = inlined_call_operand.vmem [shape: f32[8,50], index: 3, kind: output, shape index: {}]
  %s4 = sld [smem:[#allocation0]]
  $region26: #{gruvae_forward.1} parent=0
    _
  %s6 = ssub.s32 1, %s4
  %s7 = scalar_select 0, %s6, %s4
  $region1: #{gruvae_forward.1} parent=0
    #allocation2 [shape = 'u8[110592]{0}', space=vmem, size = 0x1b000, scoped, tag = 'input window, operand 2, single buffered']
    #allocation3 [shape = 's32[1]{0}', space=sflag, size = 0x4, scoped, tag = 'scoped memory for gruvae_forward.1']
    %8 = vsyncpa [#allocation3], 0
    // Predicated region
    $region2: #{gruvae_forward.1} parent=1 // pred_check
      _
    $region3: #{gruvae_forward.1} parent=1 // pred_check_branch
      %10 = sbr.rel (0) target = $region5
    $region4: #{gruvae_forward.1} parent=1 // pred_region
      _
    $region5: #{gruvae_forward.1} parent=1 // pred_fallthru
      _
    // Predicated region
    $region6: #{gruvae_forward.1} parent=1 // pred_check
      _
    $region7: #{gruvae_forward.1} parent=1 // pred_check_branch
      %12 = sbr.rel (0) target = $region9
    $region8: #{gruvae_forward.1} parent=1 // pred_region
      _
    $region9: #{gruvae_forward.1} parent=1 // pred_fallthru
      _
    // Predicated region
    $region10: #{gruvae_forward.1} parent=1 // pred_check
      _
    $region11: #{gruvae_forward.1} parent=1 // pred_check_branch
      %14 = sbr.rel (0) target = $region13
    $region12: #{gruvae_forward.1} parent=1 // pred_region
      %16 = vsyncadd [#allocation3], 0
      %s17 = sshll.u32 %s2, 4
      %s18 = int_to_ptr.hbm [resolvable:$true] %s17
      %s19 = sshll.u32 [#allocation2], 4
      %s20 = int_to_ptr.vmem [resolvable:$true] %s19
      %25 = dma.hbm_to_vmem [thread:$0]  %s18, 3456, %s20, [#allocation3], 128, 128, 8
    $region13: #{gruvae_forward.1} parent=1 // pred_fallthru
      _
    // Predicated region
    $region14: #{gruvae_forward.1} parent=1 // pred_check
      _
    $region15: #{gruvae_forward.1} parent=1 // pred_check_branch
      %27 = sbr.rel (0) target = $region17
    $region16: #{gruvae_forward.1} parent=1 // pred_region
      %29 = dma.done [#allocation3], 3456
    $region17: #{gruvae_forward.1} parent=1 // pred_fallthru
      _
    %v30 = vld [vmem:[#allocation2] sm:$0xff]
    %v31 = vld [vmem:[#allocation2 + $0x8] sm:$0xf]
    %v32 = vld [vmem:[#allocation2 + $0x10] sm:$0xff]
    %v33 = vld [vmem:[#allocation2 + $0x18] sm:$0xff]
    %v34 = vld [vmem:[#allocation2 + $0x20] sm:$0xf]
    %v35 = vld [vmem:[#allocation2 + $0x28] sm:$0x1]
    %v36 = vld [vmem:[#allocation2 + $0x30] sm:$0x1]
    %v37 = vperm.slane %v36, 0
    %v38 = vld [vmem:[%s0] sm:$0xff]
    %v39 = vld [vmem:[%s0 + $0x8] sm:$0xf]
    %v40 = vperm.slane %v35, 0
    %vm41 = vcmask 97280
    %v43 = vsel %vm41, %v38, 0
    %v46 = vsel %vm41, %v39, 0
    %vm48 = vcmask 1043456
    %v50 = vsel %vm48, %v31, 0
    %52 = vmatpush.msra.mxu0 0.0
    %53 = vmatpush.msra.mxu0 0.0
    %54 = vmatpush.msra.mxu0 0.0
    %55 = vmatpush.msra.mxu0 0.0
    %56 = vmatpush.msra.mxu0 0.0
    %57 = vmatpush.msra.mxu0 0.0
    %58 = vmatpush.msra.mxu0 0.0
    %59 = vmatpush.msra.mxu0 0.0
    %60 = vmatpush.msra.mxu0 0.0
    %61 = vmatpush.msra.mxu0 0.0
    %62 = vmatpush.msra.mxu0 0.0
    %63 = vmatpush.msra.mxu0 0.0
    %64 = vmatpush.msra.mxu0 0.0
    %65 = vmatpush.msra.mxu0 0.0
    %66 = vmatpush.msra.mxu0 %v50
    %67 = vmatpush.msra.mxu0 %v30
    %68 = vmatmul.f32.gmra.mxu0 %v43
    %v69 = vpop.f32.mrf.mxu0
    %v70 = vadd.f32 %v40, %v69
    %71 = vmatmul.f32.gmra.mxu0 %v46
    %v72 = vpop.f32.mrf.mxu0
    %v73 = vadd.f32 %v40, %v72
    %74 = vdwg.mxu0
    %75 = vrot.lane.b32.xlu0 %v38, 116
    %v76 = vpop.permute.xlu0 %75
    %77 = vrot.lane.b32.xlu0 %v39, 116
    %v78 = vpop.permute.xlu0 %77
    %v79 = vsel %vm41, %v76, 0
    %v81 = vsel %vm41, %v78, 0
    %83 = vmatpush.msra.mxu0 0.0
    %84 = vmatpush.msra.mxu0 0.0
    %85 = vmatpush.msra.mxu0 0.0
    %86 = vmatpush.msra.mxu0 0.0
    %87 = vmatpush.msra.mxu0 0.0
    %88 = vmatpush.msra.mxu0 0.0
    %89 = vmatpush.msra.mxu0 0.0
    %90 = vmatpush.msra.mxu0 0.0
    %91 = vmatpush.msra.mxu0 0.0
    %92 = vmatpush.msra.mxu0 0.0
    %93 = vmatpush.msra.mxu0 0.0
    %94 = vmatpush.msra.mxu0 0.0
    %95 = vmatpush.msra.mxu0 0.0
    %96 = vmatpush.msra.mxu0 0.0
    %97 = vmatpush.msra.mxu0 %v50
    %98 = vmatpush.msra.mxu0 %v30
    %99 = vmatmul.f32.gmra.mxu0 %v79
    %v100 = vpop.f32.mrf.mxu0
    %v101 = vadd.f32 %v40, %v100
    %102 = vmatmul.f32.gmra.mxu0 %v81
    %v103 = vpop.f32.mrf.mxu0
    %v104 = vadd.f32 %v40, %v103
    %105 = vdwg.mxu0
    %106 = vrot.lane.b32.xlu0 %v38, 104
    %v107 = vpop.permute.xlu0 %106
    %108 = vrot.lane.b32.xlu0 %v39, 104
    %v109 = vpop.permute.xlu0 %108
    %v110 = vsel %vm41, %v107, 0
    %v112 = vsel %vm41, %v109, 0
    %114 = vmatpush.msra.mxu0 0.0
    %115 = vmatpush.msra.mxu0 0.0
    %116 = vmatpush.msra.mxu0 0.0
    %117 = vmatpush.msra.mxu0 0.0
    %118 = vmatpush.msra.mxu0 0.0
    %119 = vmatpush.msra.mxu0 0.0
    %120 = vmatpush.msra.mxu0 0.0
    %121 = vmatpush.msra.mxu0 0.0
    %122 = vmatpush.msra.mxu0 0.0
    %123 = vmatpush.msra.mxu0 0.0
    %124 = vmatpush.msra.mxu0 0.0
    %125 = vmatpush.msra.mxu0 0.0
    %126 = vmatpush.msra.mxu0 0.0
    %127 = vmatpush.msra.mxu0 0.0
    %128 = vmatpush.msra.mxu0 %v50
    %129 = vmatpush.msra.mxu0 %v30
    %130 = vmatmul.f32.gmra.mxu0 %v110
    %v131 = vpop.f32.mrf.mxu0
    %v132 = vadd.f32 %v40, %v131
    %133 = vmatmul.f32.gmra.mxu0 %v112
    %v134 = vpop.f32.mrf.mxu0
    %v135 = vadd.f32 %v40, %v134
    %136 = vdwg.mxu0
    %137 = vrot.lane.b32.xlu0 %v38, 92
    %v138 = vpop.permute.xlu0 %137
    %139 = vrot.lane.b32.xlu0 %v39, 92
    %v140 = vpop.permute.xlu0 %139
    %v141 = vsel %vm41, %v138, 0
    %v143 = vsel %vm41, %v140, 0
    %145 = vmatpush.msra.mxu0 0.0
    %146 = vmatpush.msra.mxu0 0.0
    %147 = vmatpush.msra.mxu0 0.0
    %148 = vmatpush.msra.mxu0 0.0
    %149 = vmatpush.msra.mxu0 0.0
    %150 = vmatpush.msra.mxu0 0.0
    %151 = vmatpush.msra.mxu0 0.0
    %152 = vmatpush.msra.mxu0 0.0
    %153 = vmatpush.msra.mxu0 0.0
    %154 = vmatpush.msra.mxu0 0.0
    %155 = vmatpush.msra.mxu0 0.0
    %156 = vmatpush.msra.mxu0 0.0
    %157 = vmatpush.msra.mxu0 0.0
    %158 = vmatpush.msra.mxu0 0.0
    %159 = vmatpush.msra.mxu0 %v50
    %160 = vmatpush.msra.mxu0 %v30
    %161 = vmatmul.f32.gmra.mxu0 %v141
    %v162 = vpop.f32.mrf.mxu0
    %v163 = vadd.f32 %v40, %v162
    %164 = vmatmul.f32.gmra.mxu0 %v143
    %v165 = vpop.f32.mrf.mxu0
    %v166 = vadd.f32 %v40, %v165
    %167 = vdwg.mxu0
    %vm168 = vcmask 162816
    %v170 = vsel %vm168, 0.0, 0
    %v173 = vsel %vm48, %v34, 0
    %175 = vmatpush.msra.mxu0 0.0
    %176 = vmatpush.msra.mxu0 0.0
    %177 = vmatpush.msra.mxu0 0.0
    %178 = vmatpush.msra.mxu0 0.0
    %179 = vmatpush.msra.mxu0 0.0
    %180 = vmatpush.msra.mxu0 0.0
    %181 = vmatpush.msra.mxu0 0.0
    %182 = vmatpush.msra.mxu0 0.0
    %183 = vmatpush.msra.mxu0 0.0
    %184 = vmatpush.msra.mxu0 0.0
    %185 = vmatpush.msra.mxu0 0.0
    %186 = vmatpush.msra.mxu0 0.0
    %187 = vmatpush.msra.mxu0 0.0
    %188 = vmatpush.msra.mxu0 %v173
    %189 = vmatpush.msra.mxu0 %v33
    %190 = vmatpush.msra.mxu0 %v32
    %191 = vmatmul.f32.gmra.mxu0 %v170
    %v192 = vpop.f32.mrf.mxu0
    %v193 = vadd.f32 0.0, %v192
    %194 = vmatmul.f32.gmra.mxu0 %v170
    %v195 = vpop.f32.mrf.mxu0
    %v196 = vadd.f32 0.0, %v195
    %197 = vdwg.mxu0
    %v198 = vadd.f32 %v70, %v193
    %v199 = vadd.f32 %v73, %v196
    %v200 = vxor.u32 %v198, 2147483648
    %v201 = vxor.u32 %v199, 2147483648
    %v202 = vmul.f32 %v200, 1.442695
    %v203 = vpow.pop %v202
    %v204 = vmul.f32 %v201, 1.442695
    %v205 = vpow.pop %v204
    %v206 = vadd.f32 %v203, 1.0
    %v207 = vadd.f32 %v205, 1.0
    %v208 = vrcp.pop %v206
    %v209 = vmul.f32 %v206, %v208
    %v210 = vsub.f32 1.0, %v209
    %v211 = vmul.f32 %v208, %v210
    %v212 = vadd.f32 %v208, %v211
    %vm213 = vweird.f32 %v206
    %vm214 = vweird.f32 %v208
    %vm215 = vmor %vm213, %vm214
    %v216 = vsel %vm215, %v208, %v212
    %v217 = vand.u32 2147483647, %v206
    %vm218 = vcmp.eq.f32.partialorder %v217, 8.507059e+37
    %v219 = vand.u32 %v206, 2147483648
    %v220 = vor.u32 1.1754944e-38, %v219
    %v221 = vsel %vm218, %v220, %v216
    %v222 = vmul.f32 1.0, %v221
    %v223 = vrcp.pop %v207
    %v224 = vmul.f32 %v207, %v223
    %v225 = vsub.f32 1.0, %v224
    %v226 = vmul.f32 %v223, %v225
    %v227 = vadd.f32 %v223, %v226
    %vm228 = vweird.f32 %v207
    %vm229 = vweird.f32 %v223
    %vm230 = vmor %vm228, %vm229
    %v231 = vsel %vm230, %v223, %v227
    %v232 = vand.u32 2147483647, %v207
    %vm233 = vcmp.eq.f32.partialorder %v232, 8.507059e+37
    %v234 = vand.u32 %v207, 2147483648
    %v235 = vor.u32 1.1754944e-38, %v234
    %v236 = vsel %vm233, %v235, %v231
    %v237 = vmul.f32 1.0, %v236
    %239 = vrot.lane.b32.xlu0 %v37, 40
    %v240 = vpop.permute.xlu0 %239
    %v242 = vadd.f32 %v193, %v240
    %v243 = vadd.f32 %v196, %v240
    %246 = vrot.lane.b32.xlu0 %v242, 88
    %v247 = vpop.permute.xlu0 %246
    %248 = vrot.lane.b32.xlu0 %v243, 88
    %v249 = vpop.permute.xlu0 %248
    %v252 = vmul.f32 %v222, %v247
    %v253 = vmul.f32 %v237, %v249
    %256 = vrot.lane.b32.xlu0 %v252, 40
    %v257 = vpop.permute.xlu0 %256
    %258 = vrot.lane.b32.xlu0 %v253, 40
    %v259 = vpop.permute.xlu0 %258
    %v262 = vadd.f32 %v70, %v257
    %v263 = vadd.f32 %v73, %v259
    %v264 = vtanh.pop %v262
    %v265 = vtanh.pop %v263
    %v266 = vsub.f32 1.0, %v222
    %v267 = vsub.f32 1.0, %v237
    %270 = vrot.lane.b32.xlu0 %v264, 108
    %v271 = vpop.permute.xlu0 %270
    %272 = vrot.lane.b32.xlu0 %v265, 108
    %v273 = vpop.permute.xlu0 %272
    %v276 = vmul.f32 %v266, %v271
    %v277 = vmul.f32 %v267, %v273
    %v278 = vmul.f32 %v222, 0.0
    %v279 = vmul.f32 %v237, 0.0
    %v280 = vadd.f32 %v276, %v278
    %v281 = vadd.f32 %v277, %v279
    %284 = vrot.lane.b32.xlu0 %v280, 108
    %v285 = vpop.permute.xlu0 %284
    %286 = vrot.lane.b32.xlu0 %v281, 108
    %v287 = vpop.permute.xlu0 %286
    %v288 = vsel %vm168, %v285, 0
    %v290 = vsel %vm168, %v287, 0
    %292 = vmatpush.msra.mxu0 0.0
    %293 = vmatpush.msra.mxu0 0.0
    %294 = vmatpush.msra.mxu0 0.0
    %295 = vmatpush.msra.mxu0 0.0
    %296 = vmatpush.msra.mxu0 0.0
    %297 = vmatpush.msra.mxu0 0.0
    %298 = vmatpush.msra.mxu0 0.0
    %299 = vmatpush.msra.mxu0 0.0
    %300 = vmatpush.msra.mxu0 0.0
    %301 = vmatpush.msra.mxu0 0.0
    %302 = vmatpush.msra.mxu0 0.0
    %303 = vmatpush.msra.mxu0 0.0
    %304 = vmatpush.msra.mxu0 0.0
    %305 = vmatpush.msra.mxu0 %v173
    %306 = vmatpush.msra.mxu0 %v33
    %307 = vmatpush.msra.mxu0 %v32
    %308 = vmatmul.f32.gmra.mxu0 %v288
    %v309 = vpop.f32.mrf.mxu0
    %v310 = vadd.f32 0.0, %v309
    %311 = vmatmul.f32.gmra.mxu0 %v290
    %v312 = vpop.f32.mrf.mxu0
    %v313 = vadd.f32 0.0, %v312
    %314 = vdwg.mxu0
    %v315 = vadd.f32 %v101, %v310
    %v316 = vadd.f32 %v104, %v313
    %v317 = vxor.u32 %v315, 2147483648
    %v318 = vxor.u32 %v316, 2147483648
    %v319 = vmul.f32 %v317, 1.442695
    %v320 = vpow.pop %v319
    %v321 = vmul.f32 %v318, 1.442695
    %v322 = vpow.pop %v321
    %v323 = vadd.f32 %v320, 1.0
    %v324 = vadd.f32 %v322, 1.0
    %v325 = vrcp.pop %v323
    %v326 = vmul.f32 %v323, %v325
    %v327 = vsub.f32 1.0, %v326
    %v328 = vmul.f32 %v325, %v327
    %v329 = vadd.f32 %v325, %v328
    %vm330 = vweird.f32 %v323
    %vm331 = vweird.f32 %v325
    %vm332 = vmor %vm330, %vm331
    %v333 = vsel %vm332, %v325, %v329
    %v334 = vand.u32 2147483647, %v323
    %vm335 = vcmp.eq.f32.partialorder %v334, 8.507059e+37
    %v336 = vand.u32 %v323, 2147483648
    %v337 = vor.u32 1.1754944e-38, %v336
    %v338 = vsel %vm335, %v337, %v333
    %v339 = vmul.f32 1.0, %v338
    %v340 = vrcp.pop %v324
    %v341 = vmul.f32 %v324, %v340
    %v342 = vsub.f32 1.0, %v341
    %v343 = vmul.f32 %v340, %v342
    %v344 = vadd.f32 %v340, %v343
    %vm345 = vweird.f32 %v324
    %vm346 = vweird.f32 %v340
    %vm347 = vmor %vm345, %vm346
    %v348 = vsel %vm347, %v340, %v344
    %v349 = vand.u32 2147483647, %v324
    %vm350 = vcmp.eq.f32.partialorder %v349, 8.507059e+37
    %v351 = vand.u32 %v324, 2147483648
    %v352 = vor.u32 1.1754944e-38, %v351
    %v353 = vsel %vm350, %v352, %v348
    %v354 = vmul.f32 1.0, %v353
    %v355 = vadd.f32 %v310, %v240
    %v356 = vadd.f32 %v313, %v240
    %359 = vrot.lane.b32.xlu0 %v355, 88
    %v360 = vpop.permute.xlu0 %359
    %361 = vrot.lane.b32.xlu0 %v356, 88
    %v362 = vpop.permute.xlu0 %361
    %v365 = vmul.f32 %v339, %v360
    %v366 = vmul.f32 %v354, %v362
    %369 = vrot.lane.b32.xlu0 %v365, 40
    %v370 = vpop.permute.xlu0 %369
    %371 = vrot.lane.b32.xlu0 %v366, 40
    %v372 = vpop.permute.xlu0 %371
    %v375 = vadd.f32 %v101, %v370
    %v376 = vadd.f32 %v104, %v372
    %v377 = vtanh.pop %v375
    %v378 = vtanh.pop %v376
    %v379 = vsub.f32 1.0, %v339
    %v380 = vsub.f32 1.0, %v354
    %383 = vrot.lane.b32.xlu0 %v377, 108
    %v384 = vpop.permute.xlu0 %383
    %385 = vrot.lane.b32.xlu0 %v378, 108
    %v386 = vpop.permute.xlu0 %385
    %v389 = vmul.f32 %v379, %v384
    %v390 = vmul.f32 %v380, %v386
    %v391 = vmul.f32 %v339, %v280
    %v392 = vmul.f32 %v354, %v281
    %v393 = vadd.f32 %v389, %v391
    %v394 = vadd.f32 %v390, %v392
    %397 = vrot.lane.b32.xlu0 %v393, 108
    %v398 = vpop.permute.xlu0 %397
    %399 = vrot.lane.b32.xlu0 %v394, 108
    %v400 = vpop.permute.xlu0 %399
    %v401 = vsel %vm168, %v398, 0
    %v403 = vsel %vm168, %v400, 0
    %405 = vmatpush.msra.mxu0 0.0
    %406 = vmatpush.msra.mxu0 0.0
    %407 = vmatpush.msra.mxu0 0.0
    %408 = vmatpush.msra.mxu0 0.0
    %409 = vmatpush.msra.mxu0 0.0
    %410 = vmatpush.msra.mxu0 0.0
    %411 = vmatpush.msra.mxu0 0.0
    %412 = vmatpush.msra.mxu0 0.0
    %413 = vmatpush.msra.mxu0 0.0
    %414 = vmatpush.msra.mxu0 0.0
    %415 = vmatpush.msra.mxu0 0.0
    %416 = vmatpush.msra.mxu0 0.0
    %417 = vmatpush.msra.mxu0 0.0
    %418 = vmatpush.msra.mxu0 %v173
    %419 = vmatpush.msra.mxu0 %v33
    %420 = vmatpush.msra.mxu0 %v32
    %421 = vmatmul.f32.gmra.mxu0 %v401
    %v422 = vpop.f32.mrf.mxu0
    %v423 = vadd.f32 0.0, %v422
    %424 = vmatmul.f32.gmra.mxu0 %v403
    %v425 = vpop.f32.mrf.mxu0
    %v426 = vadd.f32 0.0, %v425
    %427 = vdwg.mxu0
    %v428 = vadd.f32 %v132, %v423
    %v429 = vadd.f32 %v135, %v426
    %v430 = vxor.u32 %v428, 2147483648
    %v431 = vxor.u32 %v429, 2147483648
    %v432 = vmul.f32 %v430, 1.442695
    %v433 = vpow.pop %v432
    %v434 = vmul.f32 %v431, 1.442695
    %v435 = vpow.pop %v434
    %v436 = vadd.f32 %v433, 1.0
    %v437 = vadd.f32 %v435, 1.0
    %v438 = vrcp.pop %v436
    %v439 = vmul.f32 %v436, %v438
    %v440 = vsub.f32 1.0, %v439
    %v441 = vmul.f32 %v438, %v440
    %v442 = vadd.f32 %v438, %v441
    %vm443 = vweird.f32 %v436
    %vm444 = vweird.f32 %v438
    %vm445 = vmor %vm443, %vm444
    %v446 = vsel %vm445, %v438, %v442
    %v447 = vand.u32 2147483647, %v436
    %vm448 = vcmp.eq.f32.partialorder %v447, 8.507059e+37
    %v449 = vand.u32 %v436, 2147483648
    %v450 = vor.u32 1.1754944e-38, %v449
    %v451 = vsel %vm448, %v450, %v446
    %v452 = vmul.f32 1.0, %v451
    %v453 = vrcp.pop %v437
    %v454 = vmul.f32 %v437, %v453
    %v455 = vsub.f32 1.0, %v454
    %v456 = vmul.f32 %v453, %v455
    %v457 = vadd.f32 %v453, %v456
    %vm458 = vweird.f32 %v437
    %vm459 = vweird.f32 %v453
    %vm460 = vmor %vm458, %vm459
    %v461 = vsel %vm460, %v453, %v457
    %v462 = vand.u32 2147483647, %v437
    %vm463 = vcmp.eq.f32.partialorder %v462, 8.507059e+37
    %v464 = vand.u32 %v437, 2147483648
    %v465 = vor.u32 1.1754944e-38, %v464
    %v466 = vsel %vm463, %v465, %v461
    %v467 = vmul.f32 1.0, %v466
    %v468 = vadd.f32 %v423, %v240
    %v469 = vadd.f32 %v426, %v240
    %472 = vrot.lane.b32.xlu0 %v468, 88
    %v473 = vpop.permute.xlu0 %472
    %474 = vrot.lane.b32.xlu0 %v469, 88
    %v475 = vpop.permute.xlu0 %474
    %v478 = vmul.f32 %v452, %v473
    %v479 = vmul.f32 %v467, %v475
    %482 = vrot.lane.b32.xlu0 %v478, 40
    %v483 = vpop.permute.xlu0 %482
    %484 = vrot.lane.b32.xlu0 %v479, 40
    %v485 = vpop.permute.xlu0 %484
    %v488 = vadd.f32 %v132, %v483
    %v489 = vadd.f32 %v135, %v485
    %v490 = vtanh.pop %v488
    %v491 = vtanh.pop %v489
    %v492 = vsub.f32 1.0, %v452
    %v493 = vsub.f32 1.0, %v467
    %496 = vrot.lane.b32.xlu0 %v490, 108
    %v497 = vpop.permute.xlu0 %496
    %498 = vrot.lane.b32.xlu0 %v491, 108
    %v499 = vpop.permute.xlu0 %498
    %v502 = vmul.f32 %v492, %v497
    %v503 = vmul.f32 %v493, %v499
    %v504 = vmul.f32 %v452, %v393
    %v505 = vmul.f32 %v467, %v394
    %v506 = vadd.f32 %v502, %v504
    %v507 = vadd.f32 %v503, %v505
    %510 = vrot.lane.b32.xlu0 %v506, 108
    %v511 = vpop.permute.xlu0 %510
    %512 = vrot.lane.b32.xlu0 %v507, 108
    %v513 = vpop.permute.xlu0 %512
    %v514 = vsel %vm168, %v511, 0
    %v516 = vsel %vm168, %v513, 0
    %518 = vmatpush.msra.mxu0 0.0
    %519 = vmatpush.msra.mxu0 0.0
    %520 = vmatpush.msra.mxu0 0.0
    %521 = vmatpush.msra.mxu0 0.0
    %522 = vmatpush.msra.mxu0 0.0
    %523 = vmatpush.msra.mxu0 0.0
    %524 = vmatpush.msra.mxu0 0.0
    %525 = vmatpush.msra.mxu0 0.0
    %526 = vmatpush.msra.mxu0 0.0
    %527 = vmatpush.msra.mxu0 0.0
    %528 = vmatpush.msra.mxu0 0.0
    %529 = vmatpush.msra.mxu0 0.0
    %530 = vmatpush.msra.mxu0 0.0
    %531 = vmatpush.msra.mxu0 %v173
    %532 = vmatpush.msra.mxu0 %v33
    %533 = vmatpush.msra.mxu0 %v32
    %534 = vmatmul.f32.gmra.mxu0 %v514
    %v535 = vpop.f32.mrf.mxu0
    %v536 = vadd.f32 0.0, %v535
    %537 = vmatmul.f32.gmra.mxu0 %v516
    %v538 = vpop.f32.mrf.mxu0
    %v539 = vadd.f32 0.0, %v538
    %540 = vdwg.mxu0
    %v541 = vadd.f32 %v163, %v536
    %v542 = vadd.f32 %v166, %v539
    %v543 = vxor.u32 %v541, 2147483648
    %v544 = vxor.u32 %v542, 2147483648
    %v545 = vmul.f32 %v543, 1.442695
    %v546 = vpow.pop %v545
    %v547 = vmul.f32 %v544, 1.442695
    %v548 = vpow.pop %v547
    %v549 = vadd.f32 %v546, 1.0
    %v550 = vadd.f32 %v548, 1.0
    %v551 = vrcp.pop %v549
    %v552 = vmul.f32 %v549, %v551
    %v553 = vsub.f32 1.0, %v552
    %v554 = vmul.f32 %v551, %v553
    %v555 = vadd.f32 %v551, %v554
    %vm556 = vweird.f32 %v549
    %vm557 = vweird.f32 %v551
    %vm558 = vmor %vm556, %vm557
    %v559 = vsel %vm558, %v551, %v555
    %v560 = vand.u32 2147483647, %v549
    %vm561 = vcmp.eq.f32.partialorder %v560, 8.507059e+37
    %v562 = vand.u32 %v549, 2147483648
    %v563 = vor.u32 1.1754944e-38, %v562
    %v564 = vsel %vm561, %v563, %v559
    %v565 = vmul.f32 1.0, %v564
    %v566 = vrcp.pop %v550
    %v567 = vmul.f32 %v550, %v566
    %v568 = vsub.f32 1.0, %v567
    %v569 = vmul.f32 %v566, %v568
    %v570 = vadd.f32 %v566, %v569
    %vm571 = vweird.f32 %v550
    %vm572 = vweird.f32 %v566
    %vm573 = vmor %vm571, %vm572
    %v574 = vsel %vm573, %v566, %v570
    %v575 = vand.u32 2147483647, %v550
    %vm576 = vcmp.eq.f32.partialorder %v575, 8.507059e+37
    %v577 = vand.u32 %v550, 2147483648
    %v578 = vor.u32 1.1754944e-38, %v577
    %v579 = vsel %vm576, %v578, %v574
    %v580 = vmul.f32 1.0, %v579
    %v581 = vadd.f32 %v536, %v240
    %v582 = vadd.f32 %v539, %v240
    %585 = vrot.lane.b32.xlu0 %v581, 88
    %v586 = vpop.permute.xlu0 %585
    %587 = vrot.lane.b32.xlu0 %v582, 88
    %v588 = vpop.permute.xlu0 %587
    %v591 = vmul.f32 %v565, %v586
    %v592 = vmul.f32 %v580, %v588
    %595 = vrot.lane.b32.xlu0 %v591, 40
    %v596 = vpop.permute.xlu0 %595
    %597 = vrot.lane.b32.xlu0 %v592, 40
    %v598 = vpop.permute.xlu0 %597
    %v601 = vadd.f32 %v163, %v596
    %v602 = vadd.f32 %v166, %v598
    %v603 = vtanh.pop %v601
    %v604 = vtanh.pop %v602
    %v605 = vsub.f32 1.0, %v565
    %v606 = vsub.f32 1.0, %v580
    %609 = vrot.lane.b32.xlu0 %v603, 108
    %v610 = vpop.permute.xlu0 %609
    %611 = vrot.lane.b32.xlu0 %v604, 108
    %v612 = vpop.permute.xlu0 %611
    %v615 = vmul.f32 %v605, %v610
    %v616 = vmul.f32 %v606, %v612
    %v617 = vmul.f32 %v565, %v506
    %v618 = vmul.f32 %v580, %v507
    %v619 = vadd.f32 %v615, %v617
    %v620 = vadd.f32 %v616, %v618
    %v621 = vld [vmem:[#allocation2 + $0x38] sm:$0xff]
    %v622 = vld [vmem:[#allocation2 + $0x40] sm:$0xff]
    %v623 = vld [vmem:[#allocation2 + $0x48] sm:$0xf]
    %v624 = vld [vmem:[#allocation2 + $0x50] sm:$0x1]
    %v625 = vperm.slane %v624, 0
    %628 = vrot.lane.b32.xlu0 %v619, 108
    %v629 = vpop.permute.xlu0 %628
    %630 = vrot.lane.b32.xlu0 %v620, 108
    %v631 = vpop.permute.xlu0 %630
    %v632 = vsel %vm168, %v629, 0
    %v634 = vsel %vm168, %v631, 0
    %v637 = vsel %vm48, %v623, 0
    %639 = vmatpush.msra.mxu0 0.0
    %640 = vmatpush.msra.mxu0 0.0
    %641 = vmatpush.msra.mxu0 0.0
    %642 = vmatpush.msra.mxu0 0.0
    %643 = vmatpush.msra.mxu0 0.0
    %644 = vmatpush.msra.mxu0 0.0
    %645 = vmatpush.msra.mxu0 0.0
    %646 = vmatpush.msra.mxu0 0.0
    %647 = vmatpush.msra.mxu0 0.0
    %648 = vmatpush.msra.mxu0 0.0
    %649 = vmatpush.msra.mxu0 0.0
    %650 = vmatpush.msra.mxu0 0.0
    %651 = vmatpush.msra.mxu0 0.0
    %652 = vmatpush.msra.mxu0 %v637
    %653 = vmatpush.msra.mxu0 %v622
    %654 = vmatpush.msra.mxu0 %v621
    %655 = vmatmul.f32.gmra.mxu0 %v632
    %v656 = vpop.f32.mrf.mxu0
    %v657 = vadd.f32 %v625, %v656
    %658 = vmatmul.f32.gmra.mxu0 %v634
    %v659 = vpop.f32.mrf.mxu0
    %v660 = vadd.f32 %v625, %v659
    %661 = vdwg.mxu0
    %vm662 = vcmp.ge.f32.partialorder %v657, 0.0
    %vm663 = vcmp.ge.f32.partialorder %v660, 0.0
    %v664 = vmul.f32 %v657, 0.5
    %v665 = vmul.f32 %v660, 0.5
    %v666 = vsel %vm662, %v657, %v664
    %v667 = vsel %vm663, %v660, %v665
    %v670 = vadd.f32 %v666, %v138
    %v671 = vadd.f32 %v667, %v140
    %v672 = vld [vmem:[%s1] sm:$0xff]
    %v673 = vld [vmem:[%s1 + $0x8] sm:$0xf]
    %676 = vrot.lane.b32.xlu0 %v672, 6
    %v677 = vpop.permute.xlu0 %676
    %678 = vrot.lane.b32.xlu0 %v673, 6
    %v679 = vpop.permute.xlu0 %678
    %v682 = vmul.f32 %v670, %v677
    %v683 = vmul.f32 %v671, %v679
    %686 = vrot.lane.b32.xlu0 %v682, 122
    %v687 = vpop.permute.xlu0 %686
    %688 = vrot.lane.b32.xlu0 %v683, 122
    %v689 = vpop.permute.xlu0 %688
    %v692 = vadd.f32 %v670, %v687
    %v693 = vadd.f32 %v671, %v689
    %v694 = vmul.f32 %v670, %v670
    %v695 = vmul.f32 %v671, %v671
    %698 = vrot.lane.b32.xlu0 %v694, 122
    %v699 = vpop.permute.xlu0 %698
    %700 = vrot.lane.b32.xlu0 %v695, 122
    %v701 = vpop.permute.xlu0 %700
    %v704 = vadd.f32 %v694, %v699
    %v705 = vadd.f32 %v695, %v701
    %v706 = vadd.f32 %v694, 1e-08
    %v707 = vadd.f32 %v695, 1e-08
    %v708 = vlog2.pop %v706
    %v709 = vmul.f32 %v708, 0.6931472
    %v710 = vlog2.pop %v707
    %v711 = vmul.f32 %v710, 0.6931472
    %714 = vrot.lane.b32.xlu0 %v709, 122
    %v715 = vpop.permute.xlu0 %714
    %716 = vrot.lane.b32.xlu0 %v711, 122
    %v717 = vpop.permute.xlu0 %716
    %v720 = vsub.f32 %v704, %v715
    %v721 = vsub.f32 %v705, %v717
    %v722 = vsub.f32 %v720, 1.0
    %v723 = vsub.f32 %v721, 1.0
    %vm724 = vcmask 48128
    %v725 = vsel %vm724, %v722, 0.0
    %vm726 = vcmask 44032
    %v727 = vsel %vm726, %v723, 0.0
    %v728 = vadd.f32 %v725, %v727
    %729 = vadd.xlane.f32.xlu0 %v728
    %v730 = vpop.xlane.xlu0 %729
    %v731 = vrot.slane %v730, 4
    %v732 = vadd.f32 %v730, %v731
    %v733 = vrot.slane %v732, 2
    %v734 = vadd.f32 %v732, %v733
    %v735 = vrot.slane %v734, 1
    %v736 = vadd.f32 %v734, %v735
    %s737 = vtos %v736
    %s738 = smul.f32 %s737, 0.041666668
    %v739 = vld [vmem:[#allocation2 + $0x58] sm:$0x3f]
    %v740 = vld [vmem:[#allocation2 + $0x60] sm:$0xff]
    %v741 = vld [vmem:[#allocation2 + $0x68] sm:$0x3]
    %v742 = vld [vmem:[#allocation2 + $0x98] sm:$0x3f]
    %v743 = vld [vmem:[#allocation2 + $0xa0] sm:$0xff]
    %v744 = vld [vmem:[#allocation2 + $0xa8] sm:$0xf]
    %v745 = vld [vmem:[#allocation2 + $0x70] sm:$0x1]
    %v746 = vperm.slane %v745, 0
    %v748 = vsel %vm724, %v692, 0
    %v751 = vsel %vm724, %v693, 0
    %vm753 = vcmask 1045504
    %v755 = vsel %vm753, %v739, 0
    %757 = vmatpush.msra.mxu0 0.0
    %758 = vmatpush.msra.mxu0 0.0
    %759 = vmatpush.msra.mxu0 0.0
    %760 = vmatpush.msra.mxu0 0.0
    %761 = vmatpush.msra.mxu0 0.0
    %762 = vmatpush.msra.mxu0 0.0
    %763 = vmatpush.msra.mxu0 0.0
    %764 = vmatpush.msra.mxu0 0.0
    %765 = vmatpush.msra.mxu0 0.0
    %766 = vmatpush.msra.mxu0 0.0
    %767 = vmatpush.msra.mxu0 0.0
    %768 = vmatpush.msra.mxu0 0.0
    %769 = vmatpush.msra.mxu0 0.0
    %770 = vmatpush.msra.mxu0 0.0
    %771 = vmatpush.msra.mxu0 0.0
    %772 = vmatpush.msra.mxu0 %v755
    %773 = vmatmul.f32.gmra.mxu0 %v748
    %v774 = vpop.f32.mrf.mxu0
    %v775 = vadd.f32 %v746, %v774
    %776 = vmatmul.f32.gmra.mxu0 %v751
    %v777 = vpop.f32.mrf.mxu0
    %v778 = vadd.f32 %v746, %v777
    %779 = vdwg.mxu0
    %v780 = vld [vmem:[#allocation2 + $0xb0] sm:$0x1]
    %v781 = vperm.slane %v780, 0
    %v783 = vsel %vm753, %v742, 0
    %785 = vmatpush.msra.mxu0 0.0
    %786 = vmatpush.msra.mxu0 0.0
    %787 = vmatpush.msra.mxu0 0.0
    %788 = vmatpush.msra.mxu0 0.0
    %789 = vmatpush.msra.mxu0 0.0
    %790 = vmatpush.msra.mxu0 0.0
    %791 = vmatpush.msra.mxu0 0.0
    %792 = vmatpush.msra.mxu0 0.0
    %793 = vmatpush.msra.mxu0 0.0
    %794 = vmatpush.msra.mxu0 0.0
    %795 = vmatpush.msra.mxu0 0.0
    %796 = vmatpush.msra.mxu0 0.0
    %797 = vmatpush.msra.mxu0 0.0
    %798 = vmatpush.msra.mxu0 0.0
    %799 = vmatpush.msra.mxu0 0.0
    %800 = vmatpush.msra.mxu0 %v783
    %801 = vmatmul.f32.gmra.mxu0 %v748
    %v802 = vpop.f32.mrf.mxu0
    %v803 = vadd.f32 %v781, %v802
    %804 = vmatmul.f32.gmra.mxu0 %v751
    %v805 = vpop.f32.mrf.mxu0
    %v806 = vadd.f32 %v781, %v805
    %807 = vdwg.mxu0
    %v808 = vld [vmem:[#allocation2 + $0x78] sm:$0x1]
    %v809 = vperm.slane %v808, 0
    %v810 = vld [vmem:[#allocation2 + $0xb8] sm:$0x1]
    %v811 = vperm.slane %v810, 0
    %v812 = vld [vmem:[#allocation2 + $0x80] sm:$0xff]
    %v813 = vld [vmem:[#allocation2 + $0x88] sm:$0x3]
    %v814 = vld [vmem:[#allocation2 + $0x90] sm:$0x1]
    %v815 = vperm.slane %v814, 0
    %vm816 = vcmask 80896
    %v817 = vsel %vm816, 0.0, 0
    %vm819 = vcmask 1041408
    %v821 = vsel %vm819, %v741, 0
    %823 = vmatpush.msra.mxu0 0.0
    %824 = vmatpush.msra.mxu0 0.0
    %825 = vmatpush.msra.mxu0 0.0
    %826 = vmatpush.msra.mxu0 0.0
    %827 = vmatpush.msra.mxu0 0.0
    %828 = vmatpush.msra.mxu0 0.0
    %829 = vmatpush.msra.mxu0 0.0
    %830 = vmatpush.msra.mxu0 0.0
    %831 = vmatpush.msra.mxu0 0.0
    %832 = vmatpush.msra.mxu0 0.0
    %833 = vmatpush.msra.mxu0 0.0
    %834 = vmatpush.msra.mxu0 0.0
    %835 = vmatpush.msra.mxu0 0.0
    %836 = vmatpush.msra.mxu0 0.0
    %837 = vmatpush.msra.mxu0 %v821
    %838 = vmatpush.msra.mxu0 %v740
    %839 = vmatmul.f32.gmra.mxu0 %v817
    %v840 = vpop.f32.mrf.mxu0
    %v841 = vadd.f32 0.0, %v840
    %842 = vdwg.mxu0
    %v843 = vadd.f32 %v775, %v841
    %v844 = vxor.u32 %v843, 2147483648
    %v845 = vmul.f32 %v844, 1.442695
    %v846 = vpow.pop %v845
    %v847 = vadd.f32 %v846, 1.0
    %v848 = vrcp.pop %v847
    %v849 = vmul.f32 %v847, %v848
    %v850 = vsub.f32 1.0, %v849
    %v851 = vmul.f32 %v848, %v850
    %v852 = vadd.f32 %v848, %v851
    %vm853 = vweird.f32 %v847
    %vm854 = vweird.f32 %v848
    %vm855 = vmor %vm853, %vm854
    %v856 = vsel %vm855, %v848, %v852
    %v857 = vand.u32 2147483647, %v847
    %vm858 = vcmp.eq.f32.partialorder %v857, 8.507059e+37
    %v859 = vand.u32 %v847, 2147483648
    %v860 = vor.u32 1.1754944e-38, %v859
    %v861 = vsel %vm858, %v860, %v856
    %v862 = vmul.f32 1.0, %v861
    %864 = vrot.lane.b32.xlu0 %v809, 20
    %v865 = vpop.permute.xlu0 %864
    %v867 = vadd.f32 %v841, %v865
    %869 = vrot.lane.b32.xlu0 %v867, 108
    %v870 = vpop.permute.xlu0 %869
    %v872 = vmul.f32 %v862, %v870
    %874 = vrot.lane.b32.xlu0 %v872, 20
    %v875 = vpop.permute.xlu0 %874
    %v877 = vadd.f32 %v775, %v875
    %v878 = vtanh.pop %v877
    %v879 = vsub.f32 1.0, %v862
    %881 = vrot.lane.b32.xlu0 %v878, 118
    %v882 = vpop.permute.xlu0 %881
    %v884 = vmul.f32 %v879, %v882
    %v885 = vmul.f32 %v862, 0.0
    %v886 = vadd.f32 %v884, %v885
    %v887 = vsel %vm41, 0.0, 0
    %v890 = vsel %vm48, %v744, 0
    %892 = vmatpush.msra.mxu0 0.0
    %893 = vmatpush.msra.mxu0 0.0
    %894 = vmatpush.msra.mxu0 0.0
    %895 = vmatpush.msra.mxu0 0.0
    %896 = vmatpush.msra.mxu0 0.0
    %897 = vmatpush.msra.mxu0 0.0
    %898 = vmatpush.msra.mxu0 0.0
    %899 = vmatpush.msra.mxu0 0.0
    %900 = vmatpush.msra.mxu0 0.0
    %901 = vmatpush.msra.mxu0 0.0
    %902 = vmatpush.msra.mxu0 0.0
    %903 = vmatpush.msra.mxu0 0.0
    %904 = vmatpush.msra.mxu0 0.0
    %905 = vmatpush.msra.mxu0 0.0
    %906 = vmatpush.msra.mxu0 %v890
    %907 = vmatpush.msra.mxu0 %v743
    %908 = vmatmul.f32.gmra.mxu0 %v887
    %v909 = vpop.f32.mrf.mxu0
    %v910 = vadd.f32 0.0, %v909
    %911 = vdwg.mxu0
    %v912 = vadd.f32 %v803, %v910
    %v913 = vxor.u32 %v912, 2147483648
    %v914 = vmul.f32 %v913, 1.442695
    %v915 = vpow.pop %v914
    %v916 = vadd.f32 %v915, 1.0
    %v917 = vrcp.pop %v916
    %v918 = vmul.f32 %v916, %v917
    %v919 = vsub.f32 1.0, %v918
    %v920 = vmul.f32 %v917, %v919
    %v921 = vadd.f32 %v917, %v920
    %vm922 = vweird.f32 %v916
    %vm923 = vweird.f32 %v917
    %vm924 = vmor %vm922, %vm923
    %v925 = vsel %vm924, %v917, %v921
    %v926 = vand.u32 2147483647, %v916
    %vm927 = vcmp.eq.f32.partialorder %v926, 8.507059e+37
    %v928 = vand.u32 %v916, 2147483648
    %v929 = vor.u32 1.1754944e-38, %v928
    %v930 = vsel %vm927, %v929, %v925
    %v931 = vmul.f32 1.0, %v930
    %933 = vrot.lane.b32.xlu0 %v811, 24
    %v934 = vpop.permute.xlu0 %933
    %v936 = vadd.f32 %v910, %v934
    %938 = vrot.lane.b32.xlu0 %v936, 104
    %v939 = vpop.permute.xlu0 %938
    %v941 = vmul.f32 %v931, %v939
    %943 = vrot.lane.b32.xlu0 %v941, 24
    %v944 = vpop.permute.xlu0 %943
    %v946 = vadd.f32 %v803, %v944
    %v947 = vtanh.pop %v946
    %v948 = vsub.f32 1.0, %v931
    %950 = vrot.lane.b32.xlu0 %v947, 116
    %v951 = vpop.permute.xlu0 %950
    %v953 = vmul.f32 %v948, %v951
    %v954 = vmul.f32 %v931, 0.0
    %v955 = vadd.f32 %v953, %v954
    %957 = vrot.lane.b32.xlu0 %v886, 118
    %v958 = vpop.permute.xlu0 %957
    %v959 = vsel %vm816, %v958, 0
    %v962 = vsel %vm819, %v813, 0
    %964 = vmatpush.msra.mxu0 0.0
    %965 = vmatpush.msra.mxu0 0.0
    %966 = vmatpush.msra.mxu0 0.0
    %967 = vmatpush.msra.mxu0 0.0
    %968 = vmatpush.msra.mxu0 0.0
    %969 = vmatpush.msra.mxu0 0.0
    %970 = vmatpush.msra.mxu0 0.0
    %971 = vmatpush.msra.mxu0 0.0
    %972 = vmatpush.msra.mxu0 0.0
    %973 = vmatpush.msra.mxu0 0.0
    %974 = vmatpush.msra.mxu0 0.0
    %975 = vmatpush.msra.mxu0 0.0
    %976 = vmatpush.msra.mxu0 0.0
    %977 = vmatpush.msra.mxu0 0.0
    %978 = vmatpush.msra.mxu0 %v962
    %979 = vmatpush.msra.mxu0 %v812
    %980 = vmatmul.f32.gmra.mxu0 %v959
    %v981 = vpop.f32.mrf.mxu0
    %v982 = vadd.f32 %v815, %v981
    %983 = vdwg.mxu0
    %vm984 = vcmp.ge.f32.partialorder %v982, 0.0
    %v985 = vmul.f32 %v982, 0.5
    %v986 = vsel %vm984, %v982, %v985
    %987 = vst.msk [vmem:[%s3] sm:$0xff] %vm41, %v986
    %988 = vmatpush.msra.mxu0 0.0
    %989 = vmatpush.msra.mxu0 0.0
    %990 = vmatpush.msra.mxu0 0.0
    %991 = vmatpush.msra.mxu0 0.0
    %992 = vmatpush.msra.mxu0 0.0
    %993 = vmatpush.msra.mxu0 0.0
    %994 = vmatpush.msra.mxu0 0.0
    %995 = vmatpush.msra.mxu0 0.0
    %996 = vmatpush.msra.mxu0 0.0
    %997 = vmatpush.msra.mxu0 0.0
    %998 = vmatpush.msra.mxu0 0.0
    %999 = vmatpush.msra.mxu0 0.0
    %1000 = vmatpush.msra.mxu0 0.0
    %1001 = vmatpush.msra.mxu0 0.0
    %1002 = vmatpush.msra.mxu0 %v821
    %1003 = vmatpush.msra.mxu0 %v740
    %1004 = vmatmul.f32.gmra.mxu0 %v959
    %v1005 = vpop.f32.mrf.mxu0
    %v1006 = vadd.f32 0.0, %v1005
    %1007 = vdwg.mxu0
    %v1009 = vrot.slane %v1006, 7
    %v1011 = vadd.f32 %v775, %v1009
    %v1012 = vadd.f32 %v778, %v1009
    %v1013 = vxor.u32 %v1011, 2147483648
    %v1014 = vxor.u32 %v1012, 2147483648
    %v1015 = vmul.f32 %v1013, 1.442695
    %v1016 = vpow.pop %v1015
    %v1017 = vmul.f32 %v1014, 1.442695
    %v1018 = vpow.pop %v1017
    %v1019 = vadd.f32 %v1016, 1.0
    %v1020 = vadd.f32 %v1018, 1.0
    %v1021 = vrcp.pop %v1019
    %v1022 = vmul.f32 %v1019, %v1021
    %v1023 = vsub.f32 1.0, %v1022
    %v1024 = vmul.f32 %v1021, %v1023
    %v1025 = vadd.f32 %v1021, %v1024
    %vm1026 = vweird.f32 %v1019
    %vm1027 = vweird.f32 %v1021
    %vm1028 = vmor %vm1026, %vm1027
    %v1029 = vsel %vm1028, %v1021, %v1025
    %v1030 = vand.u32 2147483647, %v1019
    %vm1031 = vcmp.eq.f32.partialorder %v1030, 8.507059e+37
    %v1032 = vand.u32 %v1019, 2147483648
    %v1033 = vor.u32 1.1754944e-38, %v1032
    %v1034 = vsel %vm1031, %v1033, %v1029
    %v1035 = vmul.f32 1.0, %v1034
    %v1036 = vrcp.pop %v1020
    %v1037 = vmul.f32 %v1020, %v1036
    %v1038 = vsub.f32 1.0, %v1037
    %v1039 = vmul.f32 %v1036, %v1038
    %v1040 = vadd.f32 %v1036, %v1039
    %vm1041 = vweird.f32 %v1020
    %vm1042 = vweird.f32 %v1036
    %vm1043 = vmor %vm1041, %vm1042
    %v1044 = vsel %vm1043, %v1036, %v1040
    %v1045 = vand.u32 2147483647, %v1020
    %vm1046 = vcmp.eq.f32.partialorder %v1045, 8.507059e+37
    %v1047 = vand.u32 %v1020, 2147483648
    %v1048 = vor.u32 1.1754944e-38, %v1047
    %v1049 = vsel %vm1046, %v1048, %v1044
    %v1050 = vmul.f32 1.0, %v1049
    %v1051 = vadd.f32 %v1006, %v865
    %v1053 = vrot.slane %v1051, 7
    %1054 = vrot.lane.b32.xlu0 %v1053, 108
    %v1055 = vpop.permute.xlu0 %1054
    %v1057 = vmul.f32 %v1035, %v1055
    %v1058 = vmul.f32 %v1050, %v1055
    %1061 = vrot.lane.b32.xlu0 %v1057, 20
    %v1062 = vpop.permute.xlu0 %1061
    %1063 = vrot.lane.b32.xlu0 %v1058, 20
    %v1064 = vpop.permute.xlu0 %1063
    %v1067 = vadd.f32 %v775, %v1062
    %v1068 = vadd.f32 %v778, %v1064
    %v1069 = vtanh.pop %v1067
    %v1070 = vtanh.pop %v1068
    %v1071 = vsub.f32 1.0, %v1035
    %v1072 = vsub.f32 1.0, %v1050
    %1075 = vrot.lane.b32.xlu0 %v1069, 118
    %v1076 = vpop.permute.xlu0 %1075
    %1077 = vrot.lane.b32.xlu0 %v1070, 118
    %v1078 = vpop.permute.xlu0 %1077
    %v1081 = vmul.f32 %v1071, %v1076
    %v1082 = vmul.f32 %v1072, %v1078
    %v1083 = vrot.slane %v886, 7
    %v1085 = vmul.f32 %v1035, %v1083
    %v1086 = vmul.f32 %v1050, %v1083
    %v1087 = vadd.f32 %v1081, %v1085
    %v1088 = vadd.f32 %v1082, %v1086
    %1090 = vrot.lane.b32.xlu0 %v955, 116
    %v1091 = vpop.permute.xlu0 %1090
    %v1092 = vsel %vm41, %v1091, 0
    %1094 = vmatpush.msra.mxu0 0.0
    %1095 = vmatpush.msra.mxu0 0.0
    %1096 = vmatpush.msra.mxu0 0.0
    %1097 = vmatpush.msra.mxu0 0.0
    %1098 = vmatpush.msra.mxu0 0.0
    %1099 = vmatpush.msra.mxu0 0.0
    %1100 = vmatpush.msra.mxu0 0.0
    %1101 = vmatpush.msra.mxu0 0.0
    %1102 = vmatpush.msra.mxu0 0.0
    %1103 = vmatpush.msra.mxu0 0.0
    %1104 = vmatpush.msra.mxu0 0.0
    %1105 = vmatpush.msra.mxu0 0.0
    %1106 = vmatpush.msra.mxu0 0.0
    %1107 = vmatpush.msra.mxu0 0.0
    %1108 = vmatpush.msra.mxu0 %v890
    %1109 = vmatpush.msra.mxu0 %v743
    %1110 = vmatmul.f32.gmra.mxu0 %v1092
    %v1111 = vpop.f32.mrf.mxu0
    %v1112 = vadd.f32 0.0, %v1111
    %1113 = vdwg.mxu0
    %v1115 = vrot.slane %v1112, 7
    %v1117 = vadd.f32 %v803, %v1115
    %v1118 = vadd.f32 %v806, %v1115
    %v1119 = vxor.u32 %v1117, 2147483648
    %v1120 = vxor.u32 %v1118, 2147483648
    %v1121 = vmul.f32 %v1119, 1.442695
    %v1122 = vpow.pop %v1121
    %v1123 = vmul.f32 %v1120, 1.442695
    %v1124 = vpow.pop %v1123
    %v1125 = vadd.f32 %v1122, 1.0
    %v1126 = vadd.f32 %v1124, 1.0
    %v1127 = vrcp.pop %v1125
    %v1128 = vmul.f32 %v1125, %v1127
    %v1129 = vsub.f32 1.0, %v1128
    %v1130 = vmul.f32 %v1127, %v1129
    %v1131 = vadd.f32 %v1127, %v1130
    %vm1132 = vweird.f32 %v1125
    %vm1133 = vweird.f32 %v1127
    %vm1134 = vmor %vm1132, %vm1133
    %v1135 = vsel %vm1134, %v1127, %v1131
    %v1136 = vand.u32 2147483647, %v1125
    %vm1137 = vcmp.eq.f32.partialorder %v1136, 8.507059e+37
    %v1138 = vand.u32 %v1125, 2147483648
    %v1139 = vor.u32 1.1754944e-38, %v1138
    %v1140 = vsel %vm1137, %v1139, %v1135
    %v1141 = vmul.f32 1.0, %v1140
    %v1142 = vrcp.pop %v1126
    %v1143 = vmul.f32 %v1126, %v1142
    %v1144 = vsub.f32 1.0, %v1143
    %v1145 = vmul.f32 %v1142, %v1144
    %v1146 = vadd.f32 %v1142, %v1145
    %vm1147 = vweird.f32 %v1126
    %vm1148 = vweird.f32 %v1142
    %vm1149 = vmor %vm1147, %vm1148
    %v1150 = vsel %vm1149, %v1142, %v1146
    %v1151 = vand.u32 2147483647, %v1126
    %vm1152 = vcmp.eq.f32.partialorder %v1151, 8.507059e+37
    %v1153 = vand.u32 %v1126, 2147483648
    %v1154 = vor.u32 1.1754944e-38, %v1153
    %v1155 = vsel %vm1152, %v1154, %v1150
    %v1156 = vmul.f32 1.0, %v1155
    %v1157 = vadd.f32 %v1112, %v934
    %v1159 = vrot.slane %v1157, 7
    %1160 = vrot.lane.b32.xlu0 %v1159, 104
    %v1161 = vpop.permute.xlu0 %1160
    %v1163 = vmul.f32 %v1141, %v1161
    %v1164 = vmul.f32 %v1156, %v1161
    %1167 = vrot.lane.b32.xlu0 %v1163, 24
    %v1168 = vpop.permute.xlu0 %1167
    %1169 = vrot.lane.b32.xlu0 %v1164, 24
    %v1170 = vpop.permute.xlu0 %1169
    %v1173 = vadd.f32 %v803, %v1168
    %v1174 = vadd.f32 %v806, %v1170
    %v1175 = vtanh.pop %v1173
    %v1176 = vtanh.pop %v1174
    %v1177 = vsub.f32 1.0, %v1141
    %v1178 = vsub.f32 1.0, %v1156
    %1181 = vrot.lane.b32.xlu0 %v1175, 116
    %v1182 = vpop.permute.xlu0 %1181
    %1183 = vrot.lane.b32.xlu0 %v1176, 116
    %v1184 = vpop.permute.xlu0 %1183
    %v1187 = vmul.f32 %v1177, %v1182
    %v1188 = vmul.f32 %v1178, %v1184
    %v1189 = vrot.slane %v955, 7
    %v1191 = vmul.f32 %v1141, %v1189
    %v1192 = vmul.f32 %v1156, %v1189
    %v1193 = vadd.f32 %v1187, %v1191
    %v1194 = vadd.f32 %v1188, %v1192
    %vm1197 = vcmask 1046528
    %v1198 = vrot.slane %v1087, 1
    %v1199 = vrot.slane %v1088, 1
    %v1200 = vsel %vm1197, %v1198, %v1199
    %1201 = vrot.lane.b32.xlu0 %v1200, 118
    %v1202 = vpop.permute.xlu0 %1201
    %v1203 = vsel %vm816, %v1202, 0
    %1205 = vmatpush.msra.mxu0 0.0
    %1206 = vmatpush.msra.mxu0 0.0
    %1207 = vmatpush.msra.mxu0 0.0
    %1208 = vmatpush.msra.mxu0 0.0
    %1209 = vmatpush.msra.mxu0 0.0
    %1210 = vmatpush.msra.mxu0 0.0
    %1211 = vmatpush.msra.mxu0 0.0
    %1212 = vmatpush.msra.mxu0 0.0
    %1213 = vmatpush.msra.mxu0 0.0
    %1214 = vmatpush.msra.mxu0 0.0
    %1215 = vmatpush.msra.mxu0 0.0
    %1216 = vmatpush.msra.mxu0 0.0
    %1217 = vmatpush.msra.mxu0 0.0
    %1218 = vmatpush.msra.mxu0 0.0
    %1219 = vmatpush.msra.mxu0 %v962
    %1220 = vmatpush.msra.mxu0 %v812
    %1221 = vmatmul.f32.gmra.mxu0 %v1203
    %v1222 = vpop.f32.mrf.mxu0
    %v1223 = vadd.f32 %v815, %v1222
    %1224 = vdwg.mxu0
    %vm1225 = vcmp.ge.f32.partialorder %v1223, 0.0
    %v1226 = vmul.f32 %v1223, 0.5
    %v1227 = vsel %vm1225, %v1223, %v1226
    %1229 = vrot.lane.b32.xlu0 %v1227, 12
    %v1230 = vpop.permute.xlu0 %1229
    %vm1232 = vcmask 195680
    %1233 = vst.msk [vmem:[%s3] sm:$0xff] %vm1232, %v1230
    %1234 = vmatpush.msra.mxu0 0.0
    %1235 = vmatpush.msra.mxu0 0.0
    %1236 = vmatpush.msra.mxu0 0.0
    %1237 = vmatpush.msra.mxu0 0.0
    %1238 = vmatpush.msra.mxu0 0.0
    %1239 = vmatpush.msra.mxu0 0.0
    %1240 = vmatpush.msra.mxu0 0.0
    %1241 = vmatpush.msra.mxu0 0.0
    %1242 = vmatpush.msra.mxu0 0.0
    %1243 = vmatpush.msra.mxu0 0.0
    %1244 = vmatpush.msra.mxu0 0.0
    %1245 = vmatpush.msra.mxu0 0.0
    %1246 = vmatpush.msra.mxu0 0.0
    %1247 = vmatpush.msra.mxu0 0.0
    %1248 = vmatpush.msra.mxu0 %v821
    %1249 = vmatpush.msra.mxu0 %v740
    %1250 = vmatmul.f32.gmra.mxu0 %v1203
    %v1251 = vpop.f32.mrf.mxu0
    %v1252 = vadd.f32 0.0, %v1251
    %1253 = vdwg.mxu0
    %v1255 = vrot.slane %v1252, 6
    %v1257 = vadd.f32 %v775, %v1255
    %v1258 = vadd.f32 %v778, %v1255
    %v1259 = vxor.u32 %v1257, 2147483648
    %v1260 = vxor.u32 %v1258, 2147483648
    %v1261 = vmul.f32 %v1259, 1.442695
    %v1262 = vpow.pop %v1261
    %v1263 = vmul.f32 %v1260, 1.442695
    %v1264 = vpow.pop %v1263
    %v1265 = vadd.f32 %v1262, 1.0
    %v1266 = vadd.f32 %v1264, 1.0
    %v1267 = vrcp.pop %v1265
    %v1268 = vmul.f32 %v1265, %v1267
    %v1269 = vsub.f32 1.0, %v1268
    %v1270 = vmul.f32 %v1267, %v1269
    %v1271 = vadd.f32 %v1267, %v1270
    %vm1272 = vweird.f32 %v1265
    %vm1273 = vweird.f32 %v1267
    %vm1274 = vmor %vm1272, %vm1273
    %v1275 = vsel %vm1274, %v1267, %v1271
    %v1276 = vand.u32 2147483647, %v1265
    %vm1277 = vcmp.eq.f32.partialorder %v1276, 8.507059e+37
    %v1278 = vand.u32 %v1265, 2147483648
    %v1279 = vor.u32 1.1754944e-38, %v1278
    %v1280 = vsel %vm1277, %v1279, %v1275
    %v1281 = vmul.f32 1.0, %v1280
    %v1282 = vrcp.pop %v1266
    %v1283 = vmul.f32 %v1266, %v1282
    %v1284 = vsub.f32 1.0, %v1283
    %v1285 = vmul.f32 %v1282, %v1284
    %v1286 = vadd.f32 %v1282, %v1285
    %vm1287 = vweird.f32 %v1266
    %vm1288 = vweird.f32 %v1282
    %vm1289 = vmor %vm1287, %vm1288
    %v1290 = vsel %vm1289, %v1282, %v1286
    %v1291 = vand.u32 2147483647, %v1266
    %vm1292 = vcmp.eq.f32.partialorder %v1291, 8.507059e+37
    %v1293 = vand.u32 %v1266, 2147483648
    %v1294 = vor.u32 1.1754944e-38, %v1293
    %v1295 = vsel %vm1292, %v1294, %v1290
    %v1296 = vmul.f32 1.0, %v1295
    %v1297 = vadd.f32 %v1252, %v865
    %v1299 = vrot.slane %v1297, 6
    %1300 = vrot.lane.b32.xlu0 %v1299, 108
    %v1301 = vpop.permute.xlu0 %1300
    %v1303 = vmul.f32 %v1281, %v1301
    %v1304 = vmul.f32 %v1296, %v1301
    %1307 = vrot.lane.b32.xlu0 %v1303, 20
    %v1308 = vpop.permute.xlu0 %1307
    %1309 = vrot.lane.b32.xlu0 %v1304, 20
    %v1310 = vpop.permute.xlu0 %1309
    %v1313 = vadd.f32 %v775, %v1308
    %v1314 = vadd.f32 %v778, %v1310
    %v1315 = vtanh.pop %v1313
    %v1316 = vtanh.pop %v1314
    %v1317 = vsub.f32 1.0, %v1281
    %v1318 = vsub.f32 1.0, %v1296
    %1321 = vrot.lane.b32.xlu0 %v1315, 118
    %v1322 = vpop.permute.xlu0 %1321
    %1323 = vrot.lane.b32.xlu0 %v1316, 118
    %v1324 = vpop.permute.xlu0 %1323
    %v1327 = vmul.f32 %v1317, %v1322
    %v1328 = vmul.f32 %v1318, %v1324
    %vm1329 = vcmask 1040384
    %v1330 = vrot.slane %v1087, 7
    %v1331 = vrot.slane %v1088, 7
    %v1332 = vsel %vm1329, %v1330, %v1331
    %v1335 = vmul.f32 %v1281, %v1330
    %v1336 = vmul.f32 %v1296, %v1332
    %v1337 = vadd.f32 %v1327, %v1335
    %v1338 = vadd.f32 %v1328, %v1336
    %v1341 = vrot.slane %v1193, 1
    %v1342 = vrot.slane %v1194, 1
    %v1343 = vsel %vm1197, %v1341, %v1342
    %1344 = vrot.lane.b32.xlu0 %v1343, 116
    %v1345 = vpop.permute.xlu0 %1344
    %v1346 = vsel %vm41, %v1345, 0
    %1348 = vmatpush.msra.mxu0 0.0
    %1349 = vmatpush.msra.mxu0 0.0
    %1350 = vmatpush.msra.mxu0 0.0
    %1351 = vmatpush.msra.mxu0 0.0
    %1352 = vmatpush.msra.mxu0 0.0
    %1353 = vmatpush.msra.mxu0 0.0
    %1354 = vmatpush.msra.mxu0 0.0
    %1355 = vmatpush.msra.mxu0 0.0
    %1356 = vmatpush.msra.mxu0 0.0
    %1357 = vmatpush.msra.mxu0 0.0
    %1358 = vmatpush.msra.mxu0 0.0
    %1359 = vmatpush.msra.mxu0 0.0
    %1360 = vmatpush.msra.mxu0 0.0
    %1361 = vmatpush.msra.mxu0 0.0
    %1362 = vmatpush.msra.mxu0 %v890
    %1363 = vmatpush.msra.mxu0 %v743
    %1364 = vmatmul.f32.gmra.mxu0 %v1346
    %v1365 = vpop.f32.mrf.mxu0
    %v1366 = vadd.f32 0.0, %v1365
    %1367 = vdwg.mxu0
    %v1369 = vrot.slane %v1366, 6
    %v1371 = vadd.f32 %v803, %v1369
    %v1372 = vadd.f32 %v806, %v1369
    %v1373 = vxor.u32 %v1371, 2147483648
    %v1374 = vxor.u32 %v1372, 2147483648
    %v1375 = vmul.f32 %v1373, 1.442695
    %v1376 = vpow.pop %v1375
    %v1377 = vmul.f32 %v1374, 1.442695
    %v1378 = vpow.pop %v1377
    %v1379 = vadd.f32 %v1376, 1.0
    %v1380 = vadd.f32 %v1378, 1.0
    %v1381 = vrcp.pop %v1379
    %v1382 = vmul.f32 %v1379, %v1381
    %v1383 = vsub.f32 1.0, %v1382
    %v1384 = vmul.f32 %v1381, %v1383
    %v1385 = vadd.f32 %v1381, %v1384
    %vm1386 = vweird.f32 %v1379
    %vm1387 = vweird.f32 %v1381
    %vm1388 = vmor %vm1386, %vm1387
    %v1389 = vsel %vm1388, %v1381, %v1385
    %v1390 = vand.u32 2147483647, %v1379
    %vm1391 = vcmp.eq.f32.partialorder %v1390, 8.507059e+37
    %v1392 = vand.u32 %v1379, 2147483648
    %v1393 = vor.u32 1.1754944e-38, %v1392
    %v1394 = vsel %vm1391, %v1393, %v1389
    %v1395 = vmul.f32 1.0, %v1394
    %v1396 = vrcp.pop %v1380
    %v1397 = vmul.f32 %v1380, %v1396
    %v1398 = vsub.f32 1.0, %v1397
    %v1399 = vmul.f32 %v1396, %v1398
    %v1400 = vadd.f32 %v1396, %v1399
    %vm1401 = vweird.f32 %v1380
    %vm1402 = vweird.f32 %v1396
    %vm1403 = vmor %vm1401, %vm1402
    %v1404 = vsel %vm1403, %v1396, %v1400
    %v1405 = vand.u32 2147483647, %v1380
    %vm1406 = vcmp.eq.f32.partialorder %v1405, 8.507059e+37
    %v1407 = vand.u32 %v1380, 2147483648
    %v1408 = vor.u32 1.1754944e-38, %v1407
    %v1409 = vsel %vm1406, %v1408, %v1404
    %v1410 = vmul.f32 1.0, %v1409
    %v1411 = vadd.f32 %v1366, %v934
    %v1413 = vrot.slane %v1411, 6
    %1414 = vrot.lane.b32.xlu0 %v1413, 104
    %v1415 = vpop.permute.xlu0 %1414
    %v1417 = vmul.f32 %v1395, %v1415
    %v1418 = vmul.f32 %v1410, %v1415
    %1421 = vrot.lane.b32.xlu0 %v1417, 24
    %v1422 = vpop.permute.xlu0 %1421
    %1423 = vrot.lane.b32.xlu0 %v1418, 24
    %v1424 = vpop.permute.xlu0 %1423
    %v1427 = vadd.f32 %v803, %v1422
    %v1428 = vadd.f32 %v806, %v1424
    %v1429 = vtanh.pop %v1427
    %v1430 = vtanh.pop %v1428
    %v1431 = vsub.f32 1.0, %v1395
    %v1432 = vsub.f32 1.0, %v1410
    %1435 = vrot.lane.b32.xlu0 %v1429, 116
    %v1436 = vpop.permute.xlu0 %1435
    %1437 = vrot.lane.b32.xlu0 %v1430, 116
    %v1438 = vpop.permute.xlu0 %1437
    %v1441 = vmul.f32 %v1431, %v1436
    %v1442 = vmul.f32 %v1432, %v1438
    %v1443 = vrot.slane %v1193, 7
    %v1444 = vrot.slane %v1194, 7
    %v1445 = vsel %vm1329, %v1443, %v1444
    %v1448 = vmul.f32 %v1395, %v1443
    %v1449 = vmul.f32 %v1410, %v1445
    %v1450 = vadd.f32 %v1441, %v1448
    %v1451 = vadd.f32 %v1442, %v1449
    %v1454 = vrot.slane %v1337, 2
    %v1455 = vrot.slane %v1338, 2
    %v1456 = vsel %vm753, %v1454, %v1455
    %1457 = vrot.lane.b32.xlu0 %v1456, 118
    %v1458 = vpop.permute.xlu0 %1457
    %v1459 = vsel %vm816, %v1458, 0
    %1461 = vmatpush.msra.mxu0 0.0
    %1462 = vmatpush.msra.mxu0 0.0
    %1463 = vmatpush.msra.mxu0 0.0
    %1464 = vmatpush.msra.mxu0 0.0
    %1465 = vmatpush.msra.mxu0 0.0
    %1466 = vmatpush.msra.mxu0 0.0
    %1467 = vmatpush.msra.mxu0 0.0
    %1468 = vmatpush.msra.mxu0 0.0
    %1469 = vmatpush.msra.mxu0 0.0
    %1470 = vmatpush.msra.mxu0 0.0
    %1471 = vmatpush.msra.mxu0 0.0
    %1472 = vmatpush.msra.mxu0 0.0
    %1473 = vmatpush.msra.mxu0 0.0
    %1474 = vmatpush.msra.mxu0 0.0
    %1475 = vmatpush.msra.mxu0 %v962
    %1476 = vmatpush.msra.mxu0 %v812
    %1477 = vmatmul.f32.gmra.mxu0 %v1459
    %v1478 = vpop.f32.mrf.mxu0
    %v1479 = vadd.f32 %v815, %v1478
    %1480 = vdwg.mxu0
    %vm1481 = vcmp.ge.f32.partialorder %v1479, 0.0
    %v1482 = vmul.f32 %v1479, 0.5
    %v1483 = vsel %vm1481, %v1479, %v1482
    %1485 = vrot.lane.b32.xlu0 %v1483, 24
    %v1486 = vpop.permute.xlu0 %1485
    %vm1488 = vcmask 294080
    %1489 = vst.msk [vmem:[%s3] sm:$0xff] %vm1488, %v1486
    %1490 = vmatpush.msra.mxu0 0.0
    %1491 = vmatpush.msra.mxu0 0.0
    %1492 = vmatpush.msra.mxu0 0.0
    %1493 = vmatpush.msra.mxu0 0.0
    %1494 = vmatpush.msra.mxu0 0.0
    %1495 = vmatpush.msra.mxu0 0.0
    %1496 = vmatpush.msra.mxu0 0.0
    %1497 = vmatpush.msra.mxu0 0.0
    %1498 = vmatpush.msra.mxu0 0.0
    %1499 = vmatpush.msra.mxu0 0.0
    %1500 = vmatpush.msra.mxu0 0.0
    %1501 = vmatpush.msra.mxu0 0.0
    %1502 = vmatpush.msra.mxu0 0.0
    %1503 = vmatpush.msra.mxu0 0.0
    %1504 = vmatpush.msra.mxu0 %v821
    %1505 = vmatpush.msra.mxu0 %v740
    %1506 = vmatmul.f32.gmra.mxu0 %v1459
    %v1507 = vpop.f32.mrf.mxu0
    %v1508 = vadd.f32 0.0, %v1507
    %1509 = vdwg.mxu0
    %v1511 = vrot.slane %v1508, 5
    %v1513 = vadd.f32 %v775, %v1511
    %v1514 = vadd.f32 %v778, %v1511
    %v1515 = vxor.u32 %v1513, 2147483648
    %v1516 = vxor.u32 %v1514, 2147483648
    %v1517 = vmul.f32 %v1515, 1.442695
    %v1518 = vpow.pop %v1517
    %v1519 = vmul.f32 %v1516, 1.442695
    %v1520 = vpow.pop %v1519
    %v1521 = vadd.f32 %v1518, 1.0
    %v1522 = vadd.f32 %v1520, 1.0
    %v1523 = vrcp.pop %v1521
    %v1524 = vmul.f32 %v1521, %v1523
    %v1525 = vsub.f32 1.0, %v1524
    %v1526 = vmul.f32 %v1523, %v1525
    %v1527 = vadd.f32 %v1523, %v1526
    %vm1528 = vweird.f32 %v1521
    %vm1529 = vweird.f32 %v1523
    %vm1530 = vmor %vm1528, %vm1529
    %v1531 = vsel %vm1530, %v1523, %v1527
    %v1532 = vand.u32 2147483647, %v1521
    %vm1533 = vcmp.eq.f32.partialorder %v1532, 8.507059e+37
    %v1534 = vand.u32 %v1521, 2147483648
    %v1535 = vor.u32 1.1754944e-38, %v1534
    %v1536 = vsel %vm1533, %v1535, %v1531
    %v1537 = vmul.f32 1.0, %v1536
    %v1538 = vrcp.pop %v1522
    %v1539 = vmul.f32 %v1522, %v1538
    %v1540 = vsub.f32 1.0, %v1539
    %v1541 = vmul.f32 %v1538, %v1540
    %v1542 = vadd.f32 %v1538, %v1541
    %vm1543 = vweird.f32 %v1522
    %vm1544 = vweird.f32 %v1538
    %vm1545 = vmor %vm1543, %vm1544
    %v1546 = vsel %vm1545, %v1538, %v1542
    %v1547 = vand.u32 2147483647, %v1522
    %vm1548 = vcmp.eq.f32.partialorder %v1547, 8.507059e+37
    %v1549 = vand.u32 %v1522, 2147483648
    %v1550 = vor.u32 1.1754944e-38, %v1549
    %v1551 = vsel %vm1548, %v1550, %v1546
    %v1552 = vmul.f32 1.0, %v1551
    %v1553 = vadd.f32 %v1508, %v865
    %v1555 = vrot.slane %v1553, 5
    %1556 = vrot.lane.b32.xlu0 %v1555, 108
    %v1557 = vpop.permute.xlu0 %1556
    %v1559 = vmul.f32 %v1537, %v1557
    %v1560 = vmul.f32 %v1552, %v1557
    %1563 = vrot.lane.b32.xlu0 %v1559, 20
    %v1564 = vpop.permute.xlu0 %1563
    %1565 = vrot.lane.b32.xlu0 %v1560, 20
    %v1566 = vpop.permute.xlu0 %1565
    %v1569 = vadd.f32 %v775, %v1564
    %v1570 = vadd.f32 %v778, %v1566
    %v1571 = vtanh.pop %v1569
    %v1572 = vtanh.pop %v1570
    %v1573 = vsub.f32 1.0, %v1537
    %v1574 = vsub.f32 1.0, %v1552
    %1577 = vrot.lane.b32.xlu0 %v1571, 118
    %v1578 = vpop.permute.xlu0 %1577
    %1579 = vrot.lane.b32.xlu0 %v1572, 118
    %v1580 = vpop.permute.xlu0 %1579
    %v1583 = vmul.f32 %v1573, %v1578
    %v1584 = vmul.f32 %v1574, %v1580
    %v1585 = vrot.slane %v1337, 7
    %v1586 = vrot.slane %v1338, 7
    %v1587 = vsel %vm1329, %v1585, %v1586
    %v1590 = vmul.f32 %v1537, %v1585
    %v1591 = vmul.f32 %v1552, %v1587
    %v1592 = vadd.f32 %v1583, %v1590
    %v1593 = vadd.f32 %v1584, %v1591
    %v1596 = vrot.slane %v1450, 2
    %v1597 = vrot.slane %v1451, 2
    %v1598 = vsel %vm753, %v1596, %v1597
    %1599 = vrot.lane.b32.xlu0 %v1598, 116
    %v1600 = vpop.permute.xlu0 %1599
    %v1601 = vsel %vm41, %v1600, 0
    %1603 = vmatpush.msra.mxu0 0.0
    %1604 = vmatpush.msra.mxu0 0.0
    %1605 = vmatpush.msra.mxu0 0.0
    %1606 = vmatpush.msra.mxu0 0.0
    %1607 = vmatpush.msra.mxu0 0.0
    %1608 = vmatpush.msra.mxu0 0.0
    %1609 = vmatpush.msra.mxu0 0.0
    %1610 = vmatpush.msra.mxu0 0.0
    %1611 = vmatpush.msra.mxu0 0.0
    %1612 = vmatpush.msra.mxu0 0.0
    %1613 = vmatpush.msra.mxu0 0.0
    %1614 = vmatpush.msra.mxu0 0.0
    %1615 = vmatpush.msra.mxu0 0.0
    %1616 = vmatpush.msra.mxu0 0.0
    %1617 = vmatpush.msra.mxu0 %v890
    %1618 = vmatpush.msra.mxu0 %v743
    %1619 = vmatmul.f32.gmra.mxu0 %v1601
    %v1620 = vpop.f32.mrf.mxu0
    %v1621 = vadd.f32 0.0, %v1620
    %1622 = vdwg.mxu0
    %v1624 = vrot.slane %v1621, 5
    %v1626 = vadd.f32 %v803, %v1624
    %v1627 = vadd.f32 %v806, %v1624
    %v1628 = vxor.u32 %v1626, 2147483648
    %v1629 = vxor.u32 %v1627, 2147483648
    %v1630 = vmul.f32 %v1628, 1.442695
    %v1631 = vpow.pop %v1630
    %v1632 = vmul.f32 %v1629, 1.442695
    %v1633 = vpow.pop %v1632
    %v1634 = vadd.f32 %v1631, 1.0
    %v1635 = vadd.f32 %v1633, 1.0
    %v1636 = vrcp.pop %v1634
    %v1637 = vmul.f32 %v1634, %v1636
    %v1638 = vsub.f32 1.0, %v1637
    %v1639 = vmul.f32 %v1636, %v1638
    %v1640 = vadd.f32 %v1636, %v1639
    %vm1641 = vweird.f32 %v1634
    %vm1642 = vweird.f32 %v1636
    %vm1643 = vmor %vm1641, %vm1642
    %v1644 = vsel %vm1643, %v1636, %v1640
    %v1645 = vand.u32 2147483647, %v1634
    %vm1646 = vcmp.eq.f32.partialorder %v1645, 8.507059e+37
    %v1647 = vand.u32 %v1634, 2147483648
    %v1648 = vor.u32 1.1754944e-38, %v1647
    %v1649 = vsel %vm1646, %v1648, %v1644
    %v1650 = vmul.f32 1.0, %v1649
    %v1651 = vrcp.pop %v1635
    %v1652 = vmul.f32 %v1635, %v1651
    %v1653 = vsub.f32 1.0, %v1652
    %v1654 = vmul.f32 %v1651, %v1653
    %v1655 = vadd.f32 %v1651, %v1654
    %vm1656 = vweird.f32 %v1635
    %vm1657 = vweird.f32 %v1651
    %vm1658 = vmor %vm1656, %vm1657
    %v1659 = vsel %vm1658, %v1651, %v1655
    %v1660 = vand.u32 2147483647, %v1635
    %vm1661 = vcmp.eq.f32.partialorder %v1660, 8.507059e+37
    %v1662 = vand.u32 %v1635, 2147483648
    %v1663 = vor.u32 1.1754944e-38, %v1662
    %v1664 = vsel %vm1661, %v1663, %v1659
    %v1665 = vmul.f32 1.0, %v1664
    %v1666 = vadd.f32 %v1621, %v934
    %v1668 = vrot.slane %v1666, 5
    %1669 = vrot.lane.b32.xlu0 %v1668, 104
    %v1670 = vpop.permute.xlu0 %1669
    %v1672 = vmul.f32 %v1650, %v1670
    %v1673 = vmul.f32 %v1665, %v1670
    %1676 = vrot.lane.b32.xlu0 %v1672, 24
    %v1677 = vpop.permute.xlu0 %1676
    %1678 = vrot.lane.b32.xlu0 %v1673, 24
    %v1679 = vpop.permute.xlu0 %1678
    %v1682 = vadd.f32 %v803, %v1677
    %v1683 = vadd.f32 %v806, %v1679
    %v1684 = vtanh.pop %v1682
    %v1685 = vtanh.pop %v1683
    %v1686 = vsub.f32 1.0, %v1650
    %v1687 = vsub.f32 1.0, %v1665
    %1690 = vrot.lane.b32.xlu0 %v1684, 116
    %v1691 = vpop.permute.xlu0 %1690
    %1692 = vrot.lane.b32.xlu0 %v1685, 116
    %v1693 = vpop.permute.xlu0 %1692
    %v1696 = vmul.f32 %v1686, %v1691
    %v1697 = vmul.f32 %v1687, %v1693
    %v1698 = vrot.slane %v1450, 7
    %v1699 = vrot.slane %v1451, 7
    %v1700 = vsel %vm1329, %v1698, %v1699
    %v1703 = vmul.f32 %v1650, %v1698
    %v1704 = vmul.f32 %v1665, %v1700
    %v1705 = vadd.f32 %v1696, %v1703
    %v1706 = vadd.f32 %v1697, %v1704
    %vm1709 = vcmask 1044480
    %v1710 = vrot.slane %v1592, 3
    %v1711 = vrot.slane %v1593, 3
    %v1712 = vsel %vm1709, %v1710, %v1711
    %1713 = vrot.lane.b32.xlu0 %v1712, 118
    %v1714 = vpop.permute.xlu0 %1713
    %v1715 = vsel %vm816, %v1714, 0
    %1717 = vmatpush.msra.mxu0 0.0
    %1718 = vmatpush.msra.mxu0 0.0
    %1719 = vmatpush.msra.mxu0 0.0
    %1720 = vmatpush.msra.mxu0 0.0
    %1721 = vmatpush.msra.mxu0 0.0
    %1722 = vmatpush.msra.mxu0 0.0
    %1723 = vmatpush.msra.mxu0 0.0
    %1724 = vmatpush.msra.mxu0 0.0
    %1725 = vmatpush.msra.mxu0 0.0
    %1726 = vmatpush.msra.mxu0 0.0
    %1727 = vmatpush.msra.mxu0 0.0
    %1728 = vmatpush.msra.mxu0 0.0
    %1729 = vmatpush.msra.mxu0 0.0
    %1730 = vmatpush.msra.mxu0 0.0
    %1731 = vmatpush.msra.mxu0 %v962
    %1732 = vmatpush.msra.mxu0 %v812
    %1733 = vmatmul.f32.gmra.mxu0 %v1715
    %v1734 = vpop.f32.mrf.mxu0
    %v1735 = vadd.f32 %v815, %v1734
    %1736 = vdwg.mxu0
    %vm1737 = vcmp.ge.f32.partialorder %v1735, 0.0
    %v1738 = vmul.f32 %v1735, 0.5
    %v1739 = vsel %vm1737, %v1735, %v1738
    %1741 = vrot.lane.b32.xlu0 %v1739, 36
    %v1742 = vpop.permute.xlu0 %1741
    %vm1744 = vcmask 392480
    %1745 = vst.msk [vmem:[%s3] sm:$0xff] %vm1744, %v1742
    %v1748 = vrot.slane %v670, 1
    %v1749 = vrot.slane %v671, 1
    %v1750 = vsel %vm1197, %v1748, %v1749
    %1751 = vrot.lane.b32.xlu0 %v1750, 12
    %v1752 = vpop.permute.xlu0 %1751
    %1753 = vrot.lane.b32.xlu0 %v1749, 12
    %v1754 = vpop.permute.xlu0 %1753
    %v1757 = vadd.f32 %v1705, %v1752
    %v1758 = vadd.f32 %v1706, %v1754
    %v1759 = vld [vmem:[#allocation2 + $0xc0] sm:$0xff]
    %v1760 = vld [vmem:[#allocation2 + $0xc8] sm:$0xf]
    %v1761 = vld [vmem:[#allocation2 + $0xd0] sm:$0x1]
    %v1762 = vperm.slane %v1761, 0
    %v1765 = vrot.slane %v1757, 3
    %v1766 = vrot.slane %v1758, 3
    %v1767 = vsel %vm1709, %v1765, %v1766
    %1768 = vrot.lane.b32.xlu0 %v1767, 116
    %v1769 = vpop.permute.xlu0 %1768
    %v1770 = vsel %vm41, %v1769, 0
    %v1773 = vsel %vm48, %v1760, 0
    %1775 = vmatpush.msra.mxu0 0.0
    %1776 = vmatpush.msra.mxu0 0.0
    %1777 = vmatpush.msra.mxu0 0.0
    %1778 = vmatpush.msra.mxu0 0.0
    %1779 = vmatpush.msra.mxu0 0.0
    %1780 = vmatpush.msra.mxu0 0.0
    %1781 = vmatpush.msra.mxu0 0.0
    %1782 = vmatpush.msra.mxu0 0.0
    %1783 = vmatpush.msra.mxu0 0.0
    %1784 = vmatpush.msra.mxu0 0.0
    %1785 = vmatpush.msra.mxu0 0.0
    %1786 = vmatpush.msra.mxu0 0.0
    %1787 = vmatpush.msra.mxu0 0.0
    %1788 = vmatpush.msra.mxu0 0.0
    %1789 = vmatpush.msra.mxu0 %v1773
    %1790 = vmatpush.msra.mxu0 %v1759
    %1791 = vmatmul.f32.gmra.mxu0 %v1770
    %v1792 = vpop.f32.mrf.mxu0
    %v1793 = vadd.f32 %v1762, %v1792
    %1794 = vdwg.mxu0
    %vm1795 = vcmp.ge.f32.partialorder %v1793, 0.0
    %v1796 = vmul.f32 %v1793, 0.5
    %v1797 = vsel %vm1795, %v1793, %v1796
    %1799 = vrot.lane.b32.xlu0 %v1797, 48
    %v1800 = vpop.permute.xlu0 %1799
    %vm1802 = vcmask 400768
    %1803 = vst.msk [vmem:[%s3] sm:$0xff] %vm1802, %v1800
    %v1804 = vstv %s738
    %vm1805 = vcmask 408968
    %1806 = vst.msk [vmem:[%s3] sm:$0xff] %vm1805, %v1804
    // Predicated region
    $region18: #{gruvae_forward.1} parent=1 // pred_check
      _
    $region19: #{gruvae_forward.1} parent=1 // pred_check_branch
      %1808 = sbr.rel (0) target = $region21
    $region20: #{gruvae_forward.1} parent=1 // pred_region
      _
    $region21: #{gruvae_forward.1} parent=1 // pred_fallthru
      _
    // Predicated region
    $region22: #{gruvae_forward.1} parent=1 // pred_check
      _
    $region23: #{gruvae_forward.1} parent=1 // pred_check_branch
      %1810 = sbr.rel (0) target = $region25
    $region24: #{gruvae_forward.1} parent=1 // pred_region
      _
    $region25: #{gruvae_forward.1} parent=1 // pred_fallthru
      _
    %1811 = vsyncpa [#allocation3], 1

</llo_original>
